<compile_context>
chip_gen: v6e
topology: v6e:2x2x1
jax: 0.10.0
libtpu: 0.0.40
codegen_flags: <defaults>
</compile_context>

<pallas_src>
import math
import functools

import jax
import jax.numpy as jnp
from jax.experimental import pallas as pl
from jax.experimental.pallas import tpu as pltpu

GROUPS = 4   # Conv1d(groups=4)
HEADS = 1    # self.h = 1


def _cross_transformer_kernel(scale, inv_loss_denom,
                              xq_ref, xk_ref,
                              wqT_ref, bq_ref,
                              wkT_ref, bk_ref,
                              wvT_ref, bv_ref,
                              out_ref, loss_ref, h_ref,
                              h_scr):
    """Two-phase, group-pipelined kernel (position-major / channels-last).

    Grid = (phase, group).  Phase 0: K/V group projections + H accumulation.
    Phase boundary (phase 0, last group): softmax over Pk + sparse loss.
    Phase 1: out[:, group] = Wq_g · (Xk_g @ H) + bq_g.

    xq_ref  : (B*Pq, Cg) f32   Xq group slice (channels on lanes)
    xk_ref  : (B*Pk, Cg) f32   Xk group slice
    w*T_ref : (1, Cg, Cg) bf16 per-group 1x1-conv weight, pre-transposed (in, out)
    b*_ref  : (1, Cg)    f32   per-group bias slice
    out_ref : (B*Pq, Cg) f32   output group slice, position-major
    loss_ref: (1, 1)     f32   sparse-constrain loss
    h_ref   : (B, Pk, Pq) f32  attention map H
    h_scr   : (Pk, B*Pq) f32   batch-lane-stacked H accumulator / softmax tile
    """
    p = pl.program_id(0)                 # 0: K/V + H accumulation, 1: Wq/out
    g = pl.program_id(1)                 # conv group index
    n_groups = pl.num_programs(1)
    B, Pk, Pq = h_ref.shape

    @pl.when((p == 0) & (g == 0))
    def _init():
        h_scr[...] = jnp.zeros_like(h_scr)

    @pl.when(p == 0)
    def _accumulate_h():
        wk = wkT_ref[0].astype(jnp.float32)                       # (Cg, Cg)
        wv = wvT_ref[0].astype(jnp.float32)
        k_g = (jnp.dot(xk_ref[...], wk, preferred_element_type=jnp.float32)
               + bk_ref[...])                                     # (B*Pk, Cg)
        v_g = (jnp.dot(xq_ref[...], wv, preferred_element_type=jnp.float32)
               + bv_ref[...])                                     # (B*Pq, Cg)
        for b in range(B):
            kb = k_g[b * Pk:(b + 1) * Pk, :]                      # (Pk, Cg)
            vb = v_g[b * Pq:(b + 1) * Pq, :]                      # (Pq, Cg)
            h_scr[:, b * Pq:(b + 1) * Pq] += jax.lax.dot_general(
                kb, vb, (((1,), (1,)), ((), ())),
                preferred_element_type=jnp.float32)               # (Pk, Pq)

    @pl.when((p == 0) & (g == n_groups - 1))
    def _softmax_and_loss():
        # Softmax over Pk (torch dim=-2) on the batch-lane-stacked tile.
        h = h_scr[...] * scale                                    # (Pk, B*Pq)
        h = h - jnp.max(h, axis=0, keepdims=True)
        h = jnp.exp(h)
        h = h / jnp.sum(h, axis=0, keepdims=True)                 # exact f32 divide
        h_scr[...] = h

        # sum((H @ H^T - I)^2) = sum(mid^2) - 2*trace(mid) + Pk,
        # trace(mid) = sum(H^2)  (no iota / identity construction).
        loss = jnp.zeros((), jnp.float32)
        for b in range(B):
            hb = h[:, b * Pq:(b + 1) * Pq]                        # (Pk, Pq)
            h_ref[b] = hb
            mid = jax.lax.dot_general(hb, hb, (((1,), (1,)), ((), ())),
                                      preferred_element_type=jnp.float32)
            loss = loss + (jnp.sum(mid * mid) - 2.0 * jnp.sum(hb * hb)
                           + float(Pk))
        loss_ref[...] = jnp.reshape(loss * inv_loss_denom, (1, 1))

    @pl.when(p == 1)
    def _project_out():
        # Q elimination: out = Q @ H = Wq·(Xk @ H) + bq  (softmax cols sum to 1).
        wq = wqT_ref[0].astype(jnp.float32)                       # (Cg, Cg)
        for b in range(B):
            hb = h_scr[:, b * Pq:(b + 1) * Pq]                    # (Pk, Pq)
            xkb = xk_ref[b * Pk:(b + 1) * Pk, :]                  # (Pk, Cg)
            z = jax.lax.dot_general(hb, xkb, (((0,), (0,)), ((), ())),
                                    preferred_element_type=jnp.float32)  # (Pq, Cg)
            out_ref[b * Pq:(b + 1) * Pq, :] = (
                jnp.dot(z, wq, preferred_element_type=jnp.float32)
                + bq_ref[...])


@jax.jit
def cross_transformer(xq, xk, params):
    """xq: (B, C, Pq), xk: (B, C, Pk) (NCW).  Returns (out, sparse_loss, H)."""
    B, C, Pq = xq.shape
    _, _, Pk = xk.shape
    wq, bq, wk, bk, wv, bv = params
    G = wq.shape[0]
    Cg = C // G

    # Lane-dense, position-major layout (wrapper-side layout plumbing only).
    xq_pm = jnp.transpose(xq, (0, 2, 1)).reshape(B * Pq, C)       # (B*Pq, C)
    xk_pm = jnp.transpose(xk, (0, 2, 1)).reshape(B * Pk, C)       # (B*Pk, C)
    # Weights pre-transposed to (in, out) per group and stored bf16 in HBM
    # (halves the dominant weight DMA); upcast to f32 inside the kernel.
    wqT = jnp.transpose(wq, (0, 2, 1)).astype(jnp.bfloat16)       # (G, Cg, Cg)
    wkT = jnp.transpose(wk, (0, 2, 1)).astype(jnp.bfloat16)
    wvT = jnp.transpose(wv, (0, 2, 1)).astype(jnp.bfloat16)
    bq2 = bq.reshape(1, C).astype(jnp.float32)
    bk2 = bk.reshape(1, C).astype(jnp.float32)
    bv2 = bv.reshape(1, C).astype(jnp.float32)

    scale = 1.0 / math.sqrt(C / HEADS)
    inv_loss_denom = 1.0 / float(B * HEADS * Pk * Pk)
    kernel = functools.partial(_cross_transformer_kernel, scale, inv_loss_denom)

    last = G - 1
    # Index maps: phase 0 walks Wk/Wv per group; phase 1 walks Wq per group.
    # Operands a phase does not read are pinned to their previous block index
    # (no re-DMA); Wq block 0 is resident before phase 1 starts.
    in_specs = [
        pl.BlockSpec((B * Pq, Cg), lambda p, g: (0, g * (1 - p) + last * p)),   # Xq
        pl.BlockSpec((B * Pk, Cg), lambda p, g: (0, g)),                        # Xk
        pl.BlockSpec((1, Cg, Cg),  lambda p, g: (g * p, 0, 0)),                 # WqT
        pl.BlockSpec((1, Cg),      lambda p, g: (0, g * p)),                    # bq
        pl.BlockSpec((1, Cg, Cg),  lambda p, g: (g * (1 - p) + last * p, 0, 0)),# WkT
        pl.BlockSpec((1, Cg),      lambda p, g: (0, g * (1 - p) + last * p)),   # bk
        pl.BlockSpec((1, Cg, Cg),  lambda p, g: (g * (1 - p) + last * p, 0, 0)),# WvT
        pl.BlockSpec((1, Cg),      lambda p, g: (0, g * (1 - p) + last * p)),   # bv
    ]
    out_specs = [
        pl.BlockSpec((B * Pq, Cg), lambda p, g: (0, g * p)),      # out (phase 1)
        pl.BlockSpec((1, 1),       lambda p, g: (0, 0)),          # loss
        pl.BlockSpec((B, Pk, Pq),  lambda p, g: (0, 0, 0)),       # H
    ]

    flops = 2 * C * Cg * (B * Pk + 2 * B * Pq)        # K/V/Wq projections
    flops += 2 * 2 * B * Pk * Pq * C                  # H accumulation + Z
    flops += 2 * B * Pk * Pk * Pq                     # mid (loss)
    bytes_accessed = (3 * G * Cg * Cg * 2             # bf16 weights
                      + (B * Pk + 2 * B * Pq) * C * 4 # Xk, Xq, out (f32)
                      + 3 * C * 4 + B * Pk * Pq * 4 + 4)

    out_pm, loss, H = pl.pallas_call(
        kernel,
        out_shape=(jax.ShapeDtypeStruct((B * Pq, C), jnp.float32),
                   jax.ShapeDtypeStruct((1, 1), jnp.float32),
                   jax.ShapeDtypeStruct((B, Pk, Pq), jnp.float32)),
        grid_spec=pltpu.PrefetchScalarGridSpec(
            num_scalar_prefetch=0,
            grid=(2, G),                 # (phase, group) — both sequential
            in_specs=in_specs,
            out_specs=out_specs,
            scratch_shapes=[pltpu.VMEM((Pk, B * Pq), jnp.float32)]),
        compiler_params=pltpu.CompilerParams(
            dimension_semantics=("arbitrary", "arbitrary")),
        cost_estimate=pl.CostEstimate(flops=int(flops),
                                      transcendentals=int(B * Pk * Pq),
                                      bytes_accessed=int(bytes_accessed)),
    )(xq_pm, xk_pm, wqT, bq2, wkT, bk2, wvT, bv2)

    out = jnp.transpose(out_pm.reshape(B, Pq, C), (0, 2, 1))      # back to (B, C, Pq)
    return out, loss[0, 0], H.reshape(B, HEADS, Pk, Pq)


def reference(xq, xk, params):
    """Pure-JAX reference replicating the PyTorch forward semantics."""
    wq, bq, wk, bk, wv, bv = params
    B, C, Pq = xq.shape
    _, _, Pk = xk.shape
    G = wq.shape[0]
    Cg = C // G
    hp = jax.lax.Precision.HIGHEST

    def gconv(x, w, b):
        xg = x.reshape(B, G, Cg, x.shape[-1])
        y = jnp.einsum('goi,bgip->bgop', w, xg, precision=hp)
        return y.reshape(B, C, x.shape[-1]) + b[None, :, None]

    Q = gconv(xk, wq, bq)
    K = gconv(xk, wk, bk)
    V = gconv(xq, wv, bv)
    Qh = Q.reshape(B, HEADS, -1, Pk)
    Kh = K.reshape(B, HEADS, -1, Pk)
    Vh = V.reshape(B, HEADS, -1, Pq)
    H = jnp.einsum('bhci,bhcj->bhij', Kh, Vh, precision=hp) / math.sqrt(C / HEADS)
    H = jax.nn.softmax(H, axis=-2)
    iden = jnp.eye(Pk, dtype=jnp.float32)[None, None]
    mid = jnp.einsum('bhci,bhki->bhck', H, H, precision=hp)
    loss = jnp.mean((mid - iden) ** 2)
    out = jnp.einsum('bhij,bhki->bhkj', H, Qh, precision=hp).reshape(B, C, Pq)
    return out, loss, H


if __name__ == "__main__":
    key = jax.random.PRNGKey(0)
    B, C, Pk, Pq = 2, 1024, 16, 8      # module hardcodes 1024 channels, groups=4
    G, Cg = GROUPS, 1024 // GROUPS

    ks = jax.random.split(key, 8)
    xq = jax.random.normal(ks[0], (B, C, Pq), jnp.float32)
    xk = jax.random.normal(ks[1], (B, C, Pk), jnp.float32)
    wscale = 1.0 / math.sqrt(Cg)

    def bf16_round(a):
        # Kernel serves weights to the MXU from bf16 HBM storage; use
        # bf16-representable weights so kernel and reference see identical values.
        return a.astype(jnp.bfloat16).astype(jnp.float32)

    wq = bf16_round(jax.random.normal(ks[2], (G, Cg, Cg), jnp.float32) * wscale)
    wk = bf16_round(jax.random.normal(ks[3], (G, Cg, Cg), jnp.float32) * wscale)
    wv = bf16_round(jax.random.normal(ks[4], (G, Cg, Cg), jnp.float32) * wscale)
    bq = jax.random.normal(ks[5], (C,), jnp.float32) * 0.1
    bk = jax.random.normal(ks[6], (C,), jnp.float32) * 0.1
    bv = jax.random.normal(ks[7], (C,), jnp.float32) * 0.1
    params = (wq, bq, wk, bk, wv, bv)

    out, loss, H = cross_transformer(xq, xk, params)
    jax.block_until_ready((out, loss, H))

    out_r, loss_r, H_r = reference(xq, xk, params)
    assert out.shape == (B, C, Pq) and H.shape == (B, HEADS, Pk, Pq)
    assert jnp.allclose(out, out_r, atol=2e-3, rtol=2e-3), "out mismatch"
    assert jnp.allclose(H, H_r, atol=5e-4, rtol=2e-3), "H mismatch"
    assert jnp.allclose(loss, loss_r, atol=1e-4, rtol=5e-3), "loss mismatch"
    print("KERNEL_OK")
</pallas_src>

<mosaic_0001>
module attributes {stable_mosaic.version = 11 : i64} {
  func.func @_cross_transformer_kernel(%arg0: i32, %arg1: i32, %arg2: memref<16x256xf32, #tpu.memory_space<vmem>>, %arg3: memref<32x256xf32, #tpu.memory_space<vmem>>, %arg4: memref<1x256x256xbf16, #tpu.memory_space<vmem>>, %arg5: memref<1x256xf32, #tpu.memory_space<vmem>>, %arg6: memref<1x256x256xbf16, #tpu.memory_space<vmem>>, %arg7: memref<1x256xf32, #tpu.memory_space<vmem>>, %arg8: memref<1x256x256xbf16, #tpu.memory_space<vmem>>, %arg9: memref<1x256xf32, #tpu.memory_space<vmem>>, %arg10: memref<16x256xf32, #tpu.memory_space<vmem>>, %arg11: memref<1x1xf32, #tpu.memory_space<vmem>>, %arg12: memref<2x16x8xf32, #tpu.memory_space<vmem>>, %arg13: memref<16x16xf32, #tpu.memory_space<vmem>>) attributes {dimension_semantics = [#tpu.dimension_semantics<arbitrary>, #tpu.dimension_semantics<arbitrary>], iteration_bounds = array<i64: 2, 4>, scalar_prefetch = 0 : i64, scratch_operands = 1 : i64, tpu.core_type = #tpu.core_type<tc>, window_params = [{transform_indices = @transform_0, window_bounds = array<i64: 16, 256>}, {transform_indices = @transform_1, window_bounds = array<i64: 32, 256>}, {transform_indices = @transform_2, window_bounds = array<i64: 1, 256, 256>}, {transform_indices = @transform_3, window_bounds = array<i64: 1, 256>}, {transform_indices = @transform_4, window_bounds = array<i64: 1, 256, 256>}, {transform_indices = @transform_5, window_bounds = array<i64: 1, 256>}, {transform_indices = @transform_6, window_bounds = array<i64: 1, 256, 256>}, {transform_indices = @transform_7, window_bounds = array<i64: 1, 256>}, {transform_indices = @transform_8, window_bounds = array<i64: 16, 256>}, {pipeline_mode = #tpu.pipeline_mode<synchronous>, transform_indices = @transform_9, window_bounds = array<i64: 1, 1>}, {pipeline_mode = #tpu.pipeline_mode<synchronous>, transform_indices = @transform_10, window_bounds = array<i64: 2, 16, 8>}]} {
    %c0_i32 = arith.constant 0 : i32
    %0 = arith.cmpi eq, %arg0, %c0_i32 : i32
    %c0_i32_0 = arith.constant 0 : i32
    %1 = arith.cmpi eq, %arg1, %c0_i32_0 : i32
    %2 = arith.andi %0, %1 : i1
    %3 = arith.extui %2 : i1 to i32
    %c0_i32_1 = arith.constant 0 : i32
    %4 = arith.cmpi ne, %3, %c0_i32_1 : i32
    scf.if %4 {
      %cst = arith.constant 0.000000e+00 : f32
      %16 = vector.broadcast %cst : f32 to vector<16x16xf32>
      %c0 = arith.constant 0 : index
      %c0_7 = arith.constant 0 : index
      %17 = vector.load %arg13[%c0, %c0_7] : memref<16x16xf32, #tpu.memory_space<vmem>>, vector<16x16xf32>
      tpu.vector_store %arg13[%c0, %c0_7], %16 {strides = array<i32>} : memref<16x16xf32, #tpu.memory_space<vmem>>, vector<16x16xf32>,
    } else {
    }
    %c0_i32_2 = arith.constant 0 : i32
    %5 = arith.cmpi eq, %arg0, %c0_i32_2 : i32
    %6 = arith.extui %5 : i1 to i32
    %c0_i32_3 = arith.constant 0 : i32
    %7 = arith.cmpi ne, %6, %c0_i32_3 : i32
    scf.if %7 {
      %c0 = arith.constant 0 : index
      %c0_7 = arith.constant 0 : index
      %c0_8 = arith.constant 0 : index
      %16 = vector.load %arg6[%c0, %c0_7, %c0_8] : memref<1x256x256xbf16, #tpu.memory_space<vmem>>, vector<1x256x256xbf16>
      %17 = vector.shape_cast %16 : vector<1x256x256xbf16> to vector<256x256xbf16>
      %18 = arith.extf %17 : vector<256x256xbf16> to vector<256x256xf32>
      %c0_9 = arith.constant 0 : index
      %c0_10 = arith.constant 0 : index
      %c0_11 = arith.constant 0 : index
      %19 = vector.load %arg8[%c0_9, %c0_10, %c0_11] : memref<1x256x256xbf16, #tpu.memory_space<vmem>>, vector<1x256x256xbf16>
      %20 = vector.shape_cast %19 : vector<1x256x256xbf16> to vector<256x256xbf16>
      %21 = arith.extf %20 : vector<256x256xbf16> to vector<256x256xf32>
      %c0_12 = arith.constant 0 : index
      %c0_13 = arith.constant 0 : index
      %22 = vector.load %arg3[%c0_12, %c0_13] : memref<32x256xf32, #tpu.memory_space<vmem>>, vector<32x256xf32>
      %cst = arith.constant dense<0.000000e+00> : vector<32x256xf32>
      %23 = tpu.matmul %22, %18, %cst {dimension_numbers = #tpu.dot_dimension_numbers<[1], [0], [0], [1], [0, 0, 1, 1], [], []>} : vector<32x256xf32>, vector<256x256xf32>, vector<32x256xf32> -> vector<32x256xf32>
      %c0_14 = arith.constant 0 : index
      %c0_15 = arith.constant 0 : index
      %24 = vector.load %arg7[%c0_14, %c0_15] : memref<1x256xf32, #tpu.memory_space<vmem>>, vector<1x256xf32>
      %25 = vector.broadcast %24 : vector<1x256xf32> to vector<32x256xf32>
      %26 = arith.addf %23, %25 : vector<32x256xf32>
      %c0_16 = arith.constant 0 : index
      %c0_17 = arith.constant 0 : index
      %27 = vector.load %arg2[%c0_16, %c0_17] : memref<16x256xf32, #tpu.memory_space<vmem>>, vector<16x256xf32>
      %cst_18 = arith.constant dense<0.000000e+00> : vector<16x256xf32>
      %28 = tpu.matmul %27, %21, %cst_18 {dimension_numbers = #tpu.dot_dimension_numbers<[1], [0], [0], [1], [0, 0, 1, 1], [], []>} : vector<16x256xf32>, vector<256x256xf32>, vector<16x256xf32> -> vector<16x256xf32>
      %c0_19 = arith.constant 0 : index
      %c0_20 = arith.constant 0 : index
      %29 = vector.load %arg9[%c0_19, %c0_20] : memref<1x256xf32, #tpu.memory_space<vmem>>, vector<1x256xf32>
      %30 = vector.broadcast %29 : vector<1x256xf32> to vector<16x256xf32>
      %31 = arith.addf %28, %30 : vector<16x256xf32>
      %32 = vector.extract_strided_slice %26 {offsets = [0, 0], sizes = [16, 256], strides = [1, 1]} : vector<32x256xf32> to vector<16x256xf32>
      %33 = vector.extract_strided_slice %31 {offsets = [0, 0], sizes = [8, 256], strides = [1, 1]} : vector<16x256xf32> to vector<8x256xf32>
      %c0_21 = arith.constant 0 : index
      %c0_22 = arith.constant 0 : index
      %34 = vector.load %arg13[%c0_21, %c0_22] : memref<16x16xf32, #tpu.memory_space<vmem>>, vector<16x8xf32>
      %cst_23 = arith.constant dense<0.000000e+00> : vector<16x8xf32>
      %35 = tpu.matmul %32, %33, %cst_23 {dimension_numbers = #tpu.dot_dimension_numbers<[1], [1], [0], [0], [0, 0, 1, 0], [], []>} : vector<16x256xf32>, vector<8x256xf32>, vector<16x8xf32> -> vector<16x8xf32>
      %36 = arith.addf %34, %35 : vector<16x8xf32>
      %c0_24 = arith.constant 0 : index
      %c0_25 = arith.constant 0 : index
      %37 = vector.load %arg13[%c0_24, %c0_25] : memref<16x16xf32, #tpu.memory_space<vmem>>, vector<16x8xf32>
      tpu.vector_store %arg13[%c0_24, %c0_25], %36 {strides = array<i32>} : memref<16x16xf32, #tpu.memory_space<vmem>>, vector<16x8xf32>,
      %38 = vector.extract_strided_slice %26 {offsets = [16, 0], sizes = [16, 256], strides = [1, 1]} : vector<32x256xf32> to vector<16x256xf32>
      %39 = vector.extract_strided_slice %31 {offsets = [8, 0], sizes = [8, 256], strides = [1, 1]} : vector<16x256xf32> to vector<8x256xf32>
      %c0_26 = arith.constant 0 : index
      %c8 = arith.constant 8 : index
      %40 = vector.load %arg13[%c0_26, %c8] : memref<16x16xf32, #tpu.memory_space<vmem>>, vector<16x8xf32>
      %cst_27 = arith.constant dense<0.000000e+00> : vector<16x8xf32>
      %41 = tpu.matmul %38, %39, %cst_27 {dimension_numbers = #tpu.dot_dimension_numbers<[1], [1], [0], [0], [0, 0, 1, 0], [], []>} : vector<16x256xf32>, vector<8x256xf32>, vector<16x8xf32> -> vector<16x8xf32>
      %42 = arith.addf %40, %41 : vector<16x8xf32>
      %c0_28 = arith.constant 0 : index
      %c8_29 = arith.constant 8 : index
      %43 = vector.load %arg13[%c0_28, %c8_29] : memref<16x16xf32, #tpu.memory_space<vmem>>, vector<16x8xf32>
      tpu.vector_store %arg13[%c0_28, %c8_29], %42 {strides = array<i32>} : memref<16x16xf32, #tpu.memory_space<vmem>>, vector<16x8xf32>,
    } else {
    }
    %c0_i32_4 = arith.constant 0 : i32
    %8 = arith.cmpi eq, %arg0, %c0_i32_4 : i32
    %c3_i32 = arith.constant 3 : i32
    %9 = arith.cmpi eq, %arg1, %c3_i32 : i32
    %10 = arith.andi %8, %9 : i1
    %11 = arith.extui %10 : i1 to i32
    %c0_i32_5 = arith.constant 0 : i32
    %12 = arith.cmpi ne, %11, %c0_i32_5 : i32
    scf.if %12 {
      %c0 = arith.constant 0 : index
      %c0_7 = arith.constant 0 : index
      %16 = vector.load %arg13[%c0, %c0_7] : memref<16x16xf32, #tpu.memory_space<vmem>>, vector<16x16xf32>
      %cst = arith.constant 3.125000e-02 : f32
      %17 = vector.broadcast %cst : f32 to vector<16x16xf32>
      %18 = arith.mulf %16, %17 : vector<16x16xf32>
      %cst_8 = arith.constant dense<0xFF800000> : vector<16xf32>
      %19 = vector.multi_reduction <maximumf>, %18, %cst_8 [0] : vector<16x16xf32> to vector<16xf32>
      %20 = vector.shape_cast %19 : vector<16xf32> to vector<1x16xf32>
      %21 = vector.broadcast %20 : vector<1x16xf32> to vector<16x16xf32>
      %22 = arith.subf %18, %21 : vector<16x16xf32>
      %23 = math.exp %22 : vector<16x16xf32>
      %cst_9 = arith.constant dense<0.000000e+00> : vector<16xf32>
      %24 = vector.multi_reduction <add>, %23, %cst_9 [0] : vector<16x16xf32> to vector<16xf32>
      %25 = vector.shape_cast %24 : vector<16xf32> to vector<1x16xf32>
      %26 = vector.broadcast %25 : vector<1x16xf32> to vector<16x16xf32>
      %27 = arith.divf %23, %26 : vector<16x16xf32>
      %c0_10 = arith.constant 0 : index
      %c0_11 = arith.constant 0 : index
      %28 = vector.load %arg13[%c0_10, %c0_11] : memref<16x16xf32, #tpu.memory_space<vmem>>, vector<16x16xf32>
      tpu.vector_store %arg13[%c0_10, %c0_11], %27 {strides = array<i32>} : memref<16x16xf32, #tpu.memory_space<vmem>>, vector<16x16xf32>,
      %29 = vector.extract_strided_slice %27 {offsets = [0, 0], sizes = [16, 8], strides = [1, 1]} : vector<16x16xf32> to vector<16x8xf32>
      %c0_12 = arith.constant 0 : index
      %c0_13 = arith.constant 0 : index
      %c0_14 = arith.constant 0 : index
      %30 = vector.load %arg12[%c0_12, %c0_13, %c0_14] : memref<2x16x8xf32, #tpu.memory_space<vmem>>, vector<1x16x8xf32>
      %31 = vector.shape_cast %30 : vector<1x16x8xf32> to vector<16x8xf32>
      %32 = vector.shape_cast %29 : vector<16x8xf32> to vector<1x16x8xf32>
      tpu.vector_store %arg12[%c0_12, %c0_13, %c0_14], %32 {strides = array<i32>} : memref<2x16x8xf32, #tpu.memory_space<vmem>>, vector<1x16x8xf32>,
      %cst_15 = arith.constant dense<0.000000e+00> : vector<16x16xf32>
      %33 = tpu.matmul %29, %29, %cst_15 {dimension_numbers = #tpu.dot_dimension_numbers<[1], [1], [0], [0], [0, 0, 1, 0], [], []>} : vector<16x8xf32>, vector<16x8xf32>, vector<16x16xf32> -> vector<16x16xf32>
      %34 = arith.mulf %33, %33 : vector<16x16xf32>
      %35 = vector.shape_cast %34 : vector<16x16xf32> to vector<1x16x16xf32>
      %cst_16 = arith.constant dense<0.000000e+00> : vector<1xf32>
      %36 = vector.multi_reduction <add>, %35, %cst_16 [1, 2] : vector<1x16x16xf32> to vector<1xf32>
      %37 = vector.shape_cast %36 : vector<1xf32> to vector<1x1x1xf32>
      %38 = vector.extract %37[0, 0, 0] : f32 from vector<1x1x1xf32>
      %39 = arith.mulf %29, %29 : vector<16x8xf32>
      %40 = vector.shape_cast %39 : vector<16x8xf32> to vector<1x16x8xf32>
      %cst_17 = arith.constant dense<0.000000e+00> : vector<1xf32>
      %41 = vector.multi_reduction <add>, %40, %cst_17 [1, 2] : vector<1x16x8xf32> to vector<1xf32>
      %42 = vector.shape_cast %41 : vector<1xf32> to vector<1x1x1xf32>
      %43 = vector.extract %42[0, 0, 0] : f32 from vector<1x1x1xf32>
      %cst_18 = arith.constant 2.000000e+00 : f32
      %44 = arith.mulf %cst_18, %43 : f32
      %45 = arith.subf %38, %44 : f32
      %cst_19 = arith.constant 1.600000e+01 : f32
      %46 = arith.addf %45, %cst_19 : f32
      %cst_20 = arith.constant 0.000000e+00 : f32
      %47 = arith.addf %cst_20, %46 : f32
      %48 = vector.extract_strided_slice %27 {offsets = [0, 8], sizes = [16, 8], strides = [1, 1]} : vector<16x16xf32> to vector<16x8xf32>
      %c1 = arith.constant 1 : index
      %c0_21 = arith.constant 0 : index
      %c0_22 = arith.constant 0 : index
      %49 = vector.load %arg12[%c1, %c0_21, %c0_22] : memref<2x16x8xf32, #tpu.memory_space<vmem>>, vector<1x16x8xf32>
      %50 = vector.shape_cast %49 : vector<1x16x8xf32> to vector<16x8xf32>
      %51 = vector.shape_cast %48 : vector<16x8xf32> to vector<1x16x8xf32>
      tpu.vector_store %arg12[%c1, %c0_21, %c0_22], %51 {strides = array<i32>} : memref<2x16x8xf32, #tpu.memory_space<vmem>>, vector<1x16x8xf32>,
      %cst_23 = arith.constant dense<0.000000e+00> : vector<16x16xf32>
      %52 = tpu.matmul %48, %48, %cst_23 {dimension_numbers = #tpu.dot_dimension_numbers<[1], [1], [0], [0], [0, 0, 1, 0], [], []>} : vector<16x8xf32>, vector<16x8xf32>, vector<16x16xf32> -> vector<16x16xf32>
      %53 = arith.mulf %52, %52 : vector<16x16xf32>
      %54 = vector.shape_cast %53 : vector<16x16xf32> to vector<1x16x16xf32>
      %cst_24 = arith.constant dense<0.000000e+00> : vector<1xf32>
      %55 = vector.multi_reduction <add>, %54, %cst_24 [1, 2] : vector<1x16x16xf32> to vector<1xf32>
      %56 = vector.shape_cast %55 : vector<1xf32> to vector<1x1x1xf32>
      %57 = vector.extract %56[0, 0, 0] : f32 from vector<1x1x1xf32>
      %58 = arith.mulf %48, %48 : vector<16x8xf32>
      %59 = vector.shape_cast %58 : vector<16x8xf32> to vector<1x16x8xf32>
      %cst_25 = arith.constant dense<0.000000e+00> : vector<1xf32>
      %60 = vector.multi_reduction <add>, %59, %cst_25 [1, 2] : vector<1x16x8xf32> to vector<1xf32>
      %61 = vector.shape_cast %60 : vector<1xf32> to vector<1x1x1xf32>
      %62 = vector.extract %61[0, 0, 0] : f32 from vector<1x1x1xf32>
      %cst_26 = arith.constant 2.000000e+00 : f32
      %63 = arith.mulf %cst_26, %62 : f32
      %64 = arith.subf %57, %63 : f32
      %cst_27 = arith.constant 1.600000e+01 : f32
      %65 = arith.addf %64, %cst_27 : f32
      %66 = arith.addf %47, %65 : f32
      %cst_28 = arith.constant 0.001953125 : f32
      %67 = arith.mulf %66, %cst_28 : f32
      %68 = vector.broadcast %67 : f32 to vector<1x1xf32>
      %c0_29 = arith.constant 0 : index
      %c0_30 = arith.constant 0 : index
      %69 = vector.load %arg11[%c0_29, %c0_30] : memref<1x1xf32, #tpu.memory_space<vmem>>, vector<1x1xf32>
      tpu.vector_store %arg11[%c0_29, %c0_30], %68 {strides = array<i32>} : memref<1x1xf32, #tpu.memory_space<vmem>>, vector<1x1xf32>,
    } else {
    }
    %c1_i32 = arith.constant 1 : i32
    %13 = arith.cmpi eq, %arg0, %c1_i32 : i32
    %14 = arith.extui %13 : i1 to i32
    %c0_i32_6 = arith.constant 0 : i32
    %15 = arith.cmpi ne, %14, %c0_i32_6 : i32
    scf.if %15 {
      %c0 = arith.constant 0 : index
      %c0_7 = arith.constant 0 : index
      %c0_8 = arith.constant 0 : index
      %16 = vector.load %arg4[%c0, %c0_7, %c0_8] : memref<1x256x256xbf16, #tpu.memory_space<vmem>>, vector<1x256x256xbf16>
      %17 = vector.shape_cast %16 : vector<1x256x256xbf16> to vector<256x256xbf16>
      %18 = arith.extf %17 : vector<256x256xbf16> to vector<256x256xf32>
      %c0_9 = arith.constant 0 : index
      %c0_10 = arith.constant 0 : index
      %19 = vector.load %arg13[%c0_9, %c0_10] : memref<16x16xf32, #tpu.memory_space<vmem>>, vector<16x8xf32>
      %c0_11 = arith.constant 0 : index
      %c0_12 = arith.constant 0 : index
      %20 = vector.load %arg3[%c0_11, %c0_12] : memref<32x256xf32, #tpu.memory_space<vmem>>, vector<16x256xf32>
      %cst = arith.constant dense<0.000000e+00> : vector<8x256xf32>
      %21 = tpu.matmul %19, %20, %cst {dimension_numbers = #tpu.dot_dimension_numbers<[0], [0], [1], [1], [0, 1, 1, 1], [], []>} : vector<16x8xf32>, vector<16x256xf32>, vector<8x256xf32> -> vector<8x256xf32>
      %cst_13 = arith.constant dense<0.000000e+00> : vector<8x256xf32>
      %22 = tpu.matmul %21, %18, %cst_13 {dimension_numbers = #tpu.dot_dimension_numbers<[1], [0], [0], [1], [0, 0, 1, 1], [], []>} : vector<8x256xf32>, vector<256x256xf32>, vector<8x256xf32> -> vector<8x256xf32>
      %c0_14 = arith.constant 0 : index
      %c0_15 = arith.constant 0 : index
      %23 = vector.load %arg5[%c0_14, %c0_15] : memref<1x256xf32, #tpu.memory_space<vmem>>, vector<1x256xf32>
      %24 = vector.broadcast %23 : vector<1x256xf32> to vector<8x256xf32>
      %25 = arith.addf %22, %24 : vector<8x256xf32>
      %c0_16 = arith.constant 0 : index
      %c0_17 = arith.constant 0 : index
      %26 = vector.load %arg10[%c0_16, %c0_17] : memref<16x256xf32, #tpu.memory_space<vmem>>, vector<8x256xf32>
      tpu.vector_store %arg10[%c0_16, %c0_17], %25 {strides = array<i32>} : memref<16x256xf32, #tpu.memory_space<vmem>>, vector<8x256xf32>,
      %c0_18 = arith.constant 0 : index
      %c8 = arith.constant 8 : index
      %27 = vector.load %arg13[%c0_18, %c8] : memref<16x16xf32, #tpu.memory_space<vmem>>, vector<16x8xf32>
      %c16 = arith.constant 16 : index
      %c0_19 = arith.constant 0 : index
      %28 = vector.load %arg3[%c16, %c0_19] : memref<32x256xf32, #tpu.memory_space<vmem>>, vector<16x256xf32>
      %cst_20 = arith.constant dense<0.000000e+00> : vector<8x256xf32>
      %29 = tpu.matmul %27, %28, %cst_20 {dimension_numbers = #tpu.dot_dimension_numbers<[0], [0], [1], [1], [0, 1, 1, 1], [], []>} : vector<16x8xf32>, vector<16x256xf32>, vector<8x256xf32> -> vector<8x256xf32>
      %cst_21 = arith.constant dense<0.000000e+00> : vector<8x256xf32>
      %30 = tpu.matmul %29, %18, %cst_21 {dimension_numbers = #tpu.dot_dimension_numbers<[1], [0], [0], [1], [0, 0, 1, 1], [], []>} : vector<8x256xf32>, vector<256x256xf32>, vector<8x256xf32> -> vector<8x256xf32>
      %c0_22 = arith.constant 0 : index
      %c0_23 = arith.constant 0 : index
      %31 = vector.load %arg5[%c0_22, %c0_23] : memref<1x256xf32, #tpu.memory_space<vmem>>, vector<1x256xf32>
      %32 = vector.broadcast %31 : vector<1x256xf32> to vector<8x256xf32>
      %33 = arith.addf %30, %32 : vector<8x256xf32>
      %c8_24 = arith.constant 8 : index
      %c0_25 = arith.constant 0 : index
      %34 = vector.load %arg10[%c8_24, %c0_25] : memref<16x256xf32, #tpu.memory_space<vmem>>, vector<8x256xf32>
      tpu.vector_store %arg10[%c8_24, %c0_25], %33 {strides = array<i32>} : memref<16x256xf32, #tpu.memory_space<vmem>>, vector<8x256xf32>,
    } else {
    }
    return
  }
  func.func @transform_0(%arg0: i32, %arg1: i32) -> (i32, i32) {
    %c1_i32 = arith.constant 1 : i32
    %0 = arith.subi %c1_i32, %arg0 : i32
    %1 = arith.muli %arg1, %0 : i32
    %c3_i32 = arith.constant 3 : i32
    %2 = arith.muli %c3_i32, %arg0 : i32
    %3 = arith.addi %1, %2 : i32
    %c0_i32 = arith.constant 0 : i32
    %c0_i32_0 = arith.constant 0 : i32
    return %c0_i32, %3 : i32, i32
  }
  func.func @transform_1(%arg0: i32, %arg1: i32) -> (i32, i32) {
    %c0_i32 = arith.constant 0 : i32
    %c0_i32_0 = arith.constant 0 : i32
    return %c0_i32, %arg1 : i32, i32
  }
  func.func @transform_2(%arg0: i32, %arg1: i32) -> (i32, i32, i32) {
    %0 = arith.muli %arg1, %arg0 : i32
    %c0_i32 = arith.constant 0 : i32
    %c0_i32_0 = arith.constant 0 : i32
    %c0_i32_1 = arith.constant 0 : i32
    return %0, %c0_i32, %c0_i32_0 : i32, i32, i32
  }
  func.func @transform_3(%arg0: i32, %arg1: i32) -> (i32, i32) {
    %0 = arith.muli %arg1, %arg0 : i32
    %c0_i32 = arith.constant 0 : i32
    %c0_i32_0 = arith.constant 0 : i32
    return %c0_i32, %0 : i32, i32
  }
  func.func @transform_4(%arg0: i32, %arg1: i32) -> (i32, i32, i32) {
    %c1_i32 = arith.constant 1 : i32
    %0 = arith.subi %c1_i32, %arg0 : i32
    %1 = arith.muli %arg1, %0 : i32
    %c3_i32 = arith.constant 3 : i32
    %2 = arith.muli %c3_i32, %arg0 : i32
    %3 = arith.addi %1, %2 : i32
    %c0_i32 = arith.constant 0 : i32
    %c0_i32_0 = arith.constant 0 : i32
    %c0_i32_1 = arith.constant 0 : i32
    return %3, %c0_i32, %c0_i32_0 : i32, i32, i32
  }
  func.func @transform_5(%arg0: i32, %arg1: i32) -> (i32, i32) {
    %c1_i32 = arith.constant 1 : i32
    %0 = arith.subi %c1_i32, %arg0 : i32
    %1 = arith.muli %arg1, %0 : i32
    %c3_i32 = arith.constant 3 : i32
    %2 = arith.muli %c3_i32, %arg0 : i32
    %3 = arith.addi %1, %2 : i32
    %c0_i32 = arith.constant 0 : i32
    %c0_i32_0 = arith.constant 0 : i32
    return %c0_i32, %3 : i32, i32
  }
  func.func @transform_6(%arg0: i32, %arg1: i32) -> (i32, i32, i32) {
    %c1_i32 = arith.constant 1 : i32
    %0 = arith.subi %c1_i32, %arg0 : i32
    %1 = arith.muli %arg1, %0 : i32
    %c3_i32 = arith.constant 3 : i32
    %2 = arith.muli %c3_i32, %arg0 : i32
    %3 = arith.addi %1, %2 : i32
    %c0_i32 = arith.constant 0 : i32
    %c0_i32_0 = arith.constant 0 : i32
    %c0_i32_1 = arith.constant 0 : i32
    return %3, %c0_i32, %c0_i32_0 : i32, i32, i32
  }
  func.func @transform_7(%arg0: i32, %arg1: i32) -> (i32, i32) {
    %c1_i32 = arith.constant 1 : i32
    %0 = arith.subi %c1_i32, %arg0 : i32
    %1 = arith.muli %arg1, %0 : i32
    %c3_i32 = arith.constant 3 : i32
    %2 = arith.muli %c3_i32, %arg0 : i32
    %3 = arith.addi %1, %2 : i32
    %c0_i32 = arith.constant 0 : i32
    %c0_i32_0 = arith.constant 0 : i32
    return %c0_i32, %3 : i32, i32
  }
  func.func @transform_8(%arg0: i32, %arg1: i32) -> (i32, i32) {
    %0 = arith.muli %arg1, %arg0 : i32
    %c0_i32 = arith.constant 0 : i32
    %c0_i32_0 = arith.constant 0 : i32
    return %c0_i32, %0 : i32, i32
  }
  func.func @transform_9(%arg0: i32, %arg1: i32) -> (i32, i32) {
    %c0_i32 = arith.constant 0 : i32
    %c0_i32_0 = arith.constant 0 : i32
    %c0_i32_1 = arith.constant 0 : i32
    return %c0_i32, %c0_i32_0 : i32, i32
  }
  func.func @transform_10(%arg0: i32, %arg1: i32) -> (i32, i32, i32) {
    %c0_i32 = arith.constant 0 : i32
    %c0_i32_0 = arith.constant 0 : i32
    %c0_i32_1 = arith.constant 0 : i32
    %c0_i32_2 = arith.constant 0 : i32
    return %c0_i32, %c0_i32_0, %c0_i32_1 : i32, i32, i32
  }
}

</mosaic_0001>

<llo_original>
// kernel: cross_transformer.1
$region0: #{cross_transformer.1}
  #allocation0 [shape = 'u32[]', space=smem, size = 0x4, offset = 0x4, fixed_abs, tag = 'smem constant byte address 0x4 - core index']
  #allocation1 [shape = 'u32[144,128]{1,0:T(1,128)}', space=vmem, size = 0x12000, scoped, tag = 'internal scratch']
  #allocation2 [shape = 'f32[16,16]{1,0:T(8,128)}', space=vmem, size = 0x2000, scoped, tag = 'scratch operand']
  %s0 = inlined_call_operand.vmem [shape: f32[16,1024], index: 0, kind: input, shape index: {}]
  %s1 = inlined_call_operand.vmem [shape: f32[32,1024], index: 1, kind: input, shape index: {}]
  %s2 = inlined_call_operand.vmem [shape: bf16[4,256,256], index: 2, kind: input, shape index: {}]
  %s3 = inlined_call_operand.vmem [shape: f32[1,1024], index: 3, kind: input, shape index: {}]
  %s4 = inlined_call_operand.vmem [shape: bf16[4,256,256], index: 4, kind: input, shape index: {}]
  %s5 = inlined_call_operand.vmem [shape: f32[1,1024], index: 5, kind: input, shape index: {}]
  %s6 = inlined_call_operand.vmem [shape: bf16[4,256,256], index: 6, kind: input, shape index: {}]
  %s7 = inlined_call_operand.vmem [shape: f32[1,1024], index: 7, kind: input, shape index: {}]
  %s8 = inlined_call_operand.hbm [shape: f32[16,1024], index: 8, kind: output, shape index: {0}]
  %s9 = inlined_call_operand.hbm [shape: f32[1,1], index: 9, kind: output, shape index: {1}]
  %s10 = inlined_call_operand.vmem [shape: f32[2,16,8], index: 10, kind: output, shape index: {2}]
  %11 = xla_tuple %s8, %s9, %s10
  %s12 = sld [smem:[#allocation0]]
  $region143: #{cross_transformer.1} parent=0
    _
  %s14 = ssub.s32 1, %s12
  %s15 = scalar_select 0, %s14, %s12
  $region1: #{cross_transformer.1} parent=0
    #allocation3 [shape = 'u8[32768]{0}', space=vmem, size = 0x8000, scoped, tag = 'input window, operand 0']
    #allocation4 [shape = 'u8[65536]{0}', space=vmem, size = 0x10000, scoped, tag = 'input window, operand 1']
    #allocation5 [shape = 'u8[32768]{0}', space=vmem, size = 0x8000, scoped, tag = 'output window, operand 0']
    #allocation6 [shape = 's32[2]{0}', space=sflag, size = 0x8, scoped, tag = 'scoped memory for cross_transformer.1']
    #allocation7 [shape = 'u8[512]{0}', space=vmem, size = 0x400, scoped, tag = 'output window, operand 1, single buffered']
    #allocation8 [shape = 's32[1]{0}', space=sflag, size = 0x4, scoped, tag = 'scoped memory for cross_transformer.1']
    %16 = vsyncpa [#allocation6], 0
    %s17 = scalar_lea.sflag [#allocation6], 1
    %18 = vsyncpa %s17, 0
    %19 = vsyncpa [#allocation8], 0
    loop: start=0, step=1, limit=10
    $region2: #{cross_transformer.1} parent=1 // loop_pre_header
      _
    $region3: #{cross_transformer.1} parent=1 // loop_header
      %s21 = sphi 0, %s25
      %p22 = scmp.ge.s32.totalorder %s21, 10
      %s28 = sphi 0, %s40
      %s29 = sphi 0, %s36
      %s30 = sphi 0, %s28
      %s31 = sphi 0, %s29
      %s32 = sphi 0, %s30
      %s33 = sphi 0, %s31
      %s51 = sphi 0, %s53
      %s54 = sphi 0, %s51
      %s55 = sphi 0, %s54
      %s71 = sphi 0, %s55
      %s77 = sphi 0, %s79
      %s80 = sphi 0, %s77
      %s81 = sphi 0, %s80
      %s97 = sphi 0, %s81
      %s105 = sphi 0, %s107
      %s108 = sphi 0, %s105
      %s109 = sphi 0, %s108
      %s125 = sphi 0, %s109
      %s133 = sphi 0, %s135
      %s136 = sphi 0, %s133
      %s137 = sphi 0, %s136
      %s153 = sphi 0, %s137
      %s167 = sphi 0, %s169
      %s170 = sphi 0, %s167
      %s171 = sphi 0, %s170
      %s187 = sphi 0, %s171
      %s201 = sphi 0, %s203
      %s204 = sphi 0, %s201
      %s205 = sphi 0, %s204
      %s221 = sphi 0, %s205
      %s235 = sphi 0, %s237
      %s238 = sphi 0, %s235
      %s239 = sphi 0, %s238
      %s255 = sphi 0, %s239
      %s269 = sphi 0, %s271
      %s272 = sphi 0, %s269
      %s273 = sphi 0, %s272
      %s289 = sphi 0, %s273
      %s297 = sphi 0, %s299
      %s300 = sphi 0, %s297
      %s301 = sphi 0, %s300
      %s317 = sphi 0, %s301
      %s321 = sphi 0, %s321
      %s323 = sphi 0, %s321
      %s324 = sphi 0, %s323
      %s338 = sphi 0, %s324
      %s342 = sphi 0, %s342
      %s344 = sphi 0, %s342
      %s345 = sphi 0, %s344
      %s359 = sphi 0, %s345
    $region4: #{cross_transformer.1} parent=1 // loop_header_branch
      %24 = sbr.rel (%p22) target = $region8
    $region5: #{cross_transformer.1} parent=1 // loop_body
      %s26 = ssub.s32 %s21, 1
      %s27 = ssub.s32 %s21, 2
      %s34 = sadd.s32 1, %s29
      %p35 = scmp.ge.s32.totalorder %s34, 4
      %s36 = scalar_select %p35, 0, %s34
      %s37 = sadd.s32 1, %s28
      %s38 = scalar_select %p35, %s37, %s28
      %p39 = scmp.ge.s32.totalorder %s38, 2
      %s40 = scalar_select %p39, 0, %s38
      %s41 = ssub.s32 1, %s28
      %s42 = smul.u32 %s29, %s41
      %s43 = smul.u32 %s28, 3
      %s44 = sadd.s32 %s42, %s43
      %s45 = ssub.s32 1, %s40
      %s46 = smul.u32 %s36, %s45
      %s47 = smul.u32 %s40, 3
      %s48 = sadd.s32 %s46, %s47
      %s49 = ssub.s32 %s44, %s48
      %p50 = scmp.eq.s32.totalorder %s49, 0
      %s52 = sadd.s32 %s51, 1
      %s53 = scalar_select %p50, %s51, %s52
      %p56 = pneg %p50
      %p57 = scmp.eq.s32.totalorder %s21, 7
      %p58 = por %p56, %p57
      %p59 = scmp.ne.s32.totalorder %s51, %s54
      %p60 = scmp.eq.s32.totalorder %s21, 0
      %p61 = por %p59, %p60
      %p62 = scmp.ne.s32.totalorder %s51, %s54
      %p63 = scmp.eq.s32.totalorder %s26, 7
      %p64 = por %p62, %p63
      %p65 = scmp.ne.s32.totalorder %s54, %s55
      %p66 = scmp.eq.s32.totalorder %s26, 0
      %p67 = por %p65, %p66
      %p68 = scmp.ne.s32.totalorder %s54, %s55
      %p69 = scmp.eq.s32.totalorder %s27, 7
      %p70 = por %p68, %p69
      %p72 = scmp.ne.s32.totalorder %s55, %s71
      %p73 = scmp.eq.s32.totalorder %s27, 0
      %p74 = por %p72, %p73
      %s75 = ssub.s32 %s29, %s36
      %p76 = scmp.eq.s32.totalorder %s75, 0
      %s78 = sadd.s32 %s77, 1
      %s79 = scalar_select %p76, %s77, %s78
      %p82 = pneg %p76
      %p83 = scmp.eq.s32.totalorder %s21, 7
      %p84 = por %p82, %p83
      %p85 = scmp.ne.s32.totalorder %s77, %s80
      %p86 = scmp.eq.s32.totalorder %s21, 0
      %p87 = por %p85, %p86
      %p88 = scmp.ne.s32.totalorder %s77, %s80
      %p89 = scmp.eq.s32.totalorder %s26, 7
      %p90 = por %p88, %p89
      %p91 = scmp.ne.s32.totalorder %s80, %s81
      %p92 = scmp.eq.s32.totalorder %s26, 0
      %p93 = por %p91, %p92
      %p94 = scmp.ne.s32.totalorder %s80, %s81
      %p95 = scmp.eq.s32.totalorder %s27, 7
      %p96 = por %p94, %p95
      %p98 = scmp.ne.s32.totalorder %s81, %s97
      %p99 = scmp.eq.s32.totalorder %s27, 0
      %p100 = por %p98, %p99
      %s101 = smul.u32 %s29, %s28
      %s102 = smul.u32 %s36, %s40
      %s103 = ssub.s32 %s101, %s102
      %p104 = scmp.eq.s32.totalorder %s103, 0
      %s106 = sadd.s32 %s105, 1
      %s107 = scalar_select %p104, %s105, %s106
      %p110 = pneg %p104
      %p111 = scmp.eq.s32.totalorder %s21, 7
      %p112 = por %p110, %p111
      %p113 = scmp.ne.s32.totalorder %s105, %s108
      %p114 = scmp.eq.s32.totalorder %s21, 0
      %p115 = por %p113, %p114
      %p116 = scmp.ne.s32.totalorder %s105, %s108
      %p117 = scmp.eq.s32.totalorder %s26, 7
      %p118 = por %p116, %p117
      %p119 = scmp.ne.s32.totalorder %s108, %s109
      %p120 = scmp.eq.s32.totalorder %s26, 0
      %p121 = por %p119, %p120
      %p122 = scmp.ne.s32.totalorder %s108, %s109
      %p123 = scmp.eq.s32.totalorder %s27, 7
      %p124 = por %p122, %p123
      %p126 = scmp.ne.s32.totalorder %s109, %s125
      %p127 = scmp.eq.s32.totalorder %s27, 0
      %p128 = por %p126, %p127
      %s129 = smul.u32 %s29, %s28
      %s130 = smul.u32 %s36, %s40
      %s131 = ssub.s32 %s129, %s130
      %p132 = scmp.eq.s32.totalorder %s131, 0
      %s134 = sadd.s32 %s133, 1
      %s135 = scalar_select %p132, %s133, %s134
      %p138 = pneg %p132
      %p139 = scmp.eq.s32.totalorder %s21, 7
      %p140 = por %p138, %p139
      %p141 = scmp.ne.s32.totalorder %s133, %s136
      %p142 = scmp.eq.s32.totalorder %s21, 0
      %p143 = por %p141, %p142
      %p144 = scmp.ne.s32.totalorder %s133, %s136
      %p145 = scmp.eq.s32.totalorder %s26, 7
      %p146 = por %p144, %p145
      %p147 = scmp.ne.s32.totalorder %s136, %s137
      %p148 = scmp.eq.s32.totalorder %s26, 0
      %p149 = por %p147, %p148
      %p150 = scmp.ne.s32.totalorder %s136, %s137
      %p151 = scmp.eq.s32.totalorder %s27, 7
      %p152 = por %p150, %p151
      %p154 = scmp.ne.s32.totalorder %s137, %s153
      %p155 = scmp.eq.s32.totalorder %s27, 0
      %p156 = por %p154, %p155
      %s157 = ssub.s32 1, %s28
      %s158 = smul.u32 %s29, %s157
      %s159 = smul.u32 %s28, 3
      %s160 = sadd.s32 %s158, %s159
      %s161 = ssub.s32 1, %s40
      %s162 = smul.u32 %s36, %s161
      %s163 = smul.u32 %s40, 3
      %s164 = sadd.s32 %s162, %s163
      %s165 = ssub.s32 %s160, %s164
      %p166 = scmp.eq.s32.totalorder %s165, 0
      %s168 = sadd.s32 %s167, 1
      %s169 = scalar_select %p166, %s167, %s168
      %p172 = pneg %p166
      %p173 = scmp.eq.s32.totalorder %s21, 7
      %p174 = por %p172, %p173
      %p175 = scmp.ne.s32.totalorder %s167, %s170
      %p176 = scmp.eq.s32.totalorder %s21, 0
      %p177 = por %p175, %p176
      %p178 = scmp.ne.s32.totalorder %s167, %s170
      %p179 = scmp.eq.s32.totalorder %s26, 7
      %p180 = por %p178, %p179
      %p181 = scmp.ne.s32.totalorder %s170, %s171
      %p182 = scmp.eq.s32.totalorder %s26, 0
      %p183 = por %p181, %p182
      %p184 = scmp.ne.s32.totalorder %s170, %s171
      %p185 = scmp.eq.s32.totalorder %s27, 7
      %p186 = por %p184, %p185
      %p188 = scmp.ne.s32.totalorder %s171, %s187
      %p189 = scmp.eq.s32.totalorder %s27, 0
      %p190 = por %p188, %p189
      %s191 = ssub.s32 1, %s28
      %s192 = smul.u32 %s29, %s191
      %s193 = smul.u32 %s28, 3
      %s194 = sadd.s32 %s192, %s193
      %s195 = ssub.s32 1, %s40
      %s196 = smul.u32 %s36, %s195
      %s197 = smul.u32 %s40, 3
      %s198 = sadd.s32 %s196, %s197
      %s199 = ssub.s32 %s194, %s198
      %p200 = scmp.eq.s32.totalorder %s199, 0
      %s202 = sadd.s32 %s201, 1
      %s203 = scalar_select %p200, %s201, %s202
      %p206 = pneg %p200
      %p207 = scmp.eq.s32.totalorder %s21, 7
      %p208 = por %p206, %p207
      %p209 = scmp.ne.s32.totalorder %s201, %s204
      %p210 = scmp.eq.s32.totalorder %s21, 0
      %p211 = por %p209, %p210
      %p212 = scmp.ne.s32.totalorder %s201, %s204
      %p213 = scmp.eq.s32.totalorder %s26, 7
      %p214 = por %p212, %p213
      %p215 = scmp.ne.s32.totalorder %s204, %s205
      %p216 = scmp.eq.s32.totalorder %s26, 0
      %p217 = por %p215, %p216
      %p218 = scmp.ne.s32.totalorder %s204, %s205
      %p219 = scmp.eq.s32.totalorder %s27, 7
      %p220 = por %p218, %p219
      %p222 = scmp.ne.s32.totalorder %s205, %s221
      %p223 = scmp.eq.s32.totalorder %s27, 0
      %p224 = por %p222, %p223
      %s225 = ssub.s32 1, %s28
      %s226 = smul.u32 %s29, %s225
      %s227 = smul.u32 %s28, 3
      %s228 = sadd.s32 %s226, %s227
      %s229 = ssub.s32 1, %s40
      %s230 = smul.u32 %s36, %s229
      %s231 = smul.u32 %s40, 3
      %s232 = sadd.s32 %s230, %s231
      %s233 = ssub.s32 %s228, %s232
      %p234 = scmp.eq.s32.totalorder %s233, 0
      %s236 = sadd.s32 %s235, 1
      %s237 = scalar_select %p234, %s235, %s236
      %p240 = pneg %p234
      %p241 = scmp.eq.s32.totalorder %s21, 7
      %p242 = por %p240, %p241
      %p243 = scmp.ne.s32.totalorder %s235, %s238
      %p244 = scmp.eq.s32.totalorder %s21, 0
      %p245 = por %p243, %p244
      %p246 = scmp.ne.s32.totalorder %s235, %s238
      %p247 = scmp.eq.s32.totalorder %s26, 7
      %p248 = por %p246, %p247
      %p249 = scmp.ne.s32.totalorder %s238, %s239
      %p250 = scmp.eq.s32.totalorder %s26, 0
      %p251 = por %p249, %p250
      %p252 = scmp.ne.s32.totalorder %s238, %s239
      %p253 = scmp.eq.s32.totalorder %s27, 7
      %p254 = por %p252, %p253
      %p256 = scmp.ne.s32.totalorder %s239, %s255
      %p257 = scmp.eq.s32.totalorder %s27, 0
      %p258 = por %p256, %p257
      %s259 = ssub.s32 1, %s28
      %s260 = smul.u32 %s29, %s259
      %s261 = smul.u32 %s28, 3
      %s262 = sadd.s32 %s260, %s261
      %s263 = ssub.s32 1, %s40
      %s264 = smul.u32 %s36, %s263
      %s265 = smul.u32 %s40, 3
      %s266 = sadd.s32 %s264, %s265
      %s267 = ssub.s32 %s262, %s266
      %p268 = scmp.eq.s32.totalorder %s267, 0
      %s270 = sadd.s32 %s269, 1
      %s271 = scalar_select %p268, %s269, %s270
      %p274 = pneg %p268
      %p275 = scmp.eq.s32.totalorder %s21, 7
      %p276 = por %p274, %p275
      %p277 = scmp.ne.s32.totalorder %s269, %s272
      %p278 = scmp.eq.s32.totalorder %s21, 0
      %p279 = por %p277, %p278
      %p280 = scmp.ne.s32.totalorder %s269, %s272
      %p281 = scmp.eq.s32.totalorder %s26, 7
      %p282 = por %p280, %p281
      %p283 = scmp.ne.s32.totalorder %s272, %s273
      %p284 = scmp.eq.s32.totalorder %s26, 0
      %p285 = por %p283, %p284
      %p286 = scmp.ne.s32.totalorder %s272, %s273
      %p287 = scmp.eq.s32.totalorder %s27, 7
      %p288 = por %p286, %p287
      %p290 = scmp.ne.s32.totalorder %s273, %s289
      %p291 = scmp.eq.s32.totalorder %s27, 0
      %p292 = por %p290, %p291
      %s293 = smul.u32 %s29, %s28
      %s294 = smul.u32 %s36, %s40
      %s295 = ssub.s32 %s293, %s294
      %p296 = scmp.eq.s32.totalorder %s295, 0
      %s298 = sadd.s32 %s297, 1
      %s299 = scalar_select %p296, %s297, %s298
      %p302 = pneg %p296
      %p303 = scmp.eq.s32.totalorder %s21, 7
      %p304 = por %p302, %p303
      %p305 = scmp.ne.s32.totalorder %s297, %s300
      %p306 = scmp.eq.s32.totalorder %s21, 0
      %p307 = por %p305, %p306
      %p308 = scmp.ne.s32.totalorder %s297, %s300
      %p309 = scmp.eq.s32.totalorder %s26, 7
      %p310 = por %p308, %p309
      %p311 = scmp.ne.s32.totalorder %s300, %s301
      %p312 = scmp.eq.s32.totalorder %s26, 0
      %p313 = por %p311, %p312
      %p314 = scmp.ne.s32.totalorder %s300, %s301
      %p315 = scmp.eq.s32.totalorder %s27, 7
      %p316 = por %p314, %p315
      %p318 = scmp.ne.s32.totalorder %s301, %s317
      %p319 = scmp.eq.s32.totalorder %s27, 0
      %p320 = por %p318, %p319
      %s322 = sadd.s32 %s321, 1
      %p325 = scmp.eq.s32.totalorder %s21, 7
      %p326 = scmp.ne.s32.totalorder %s321, %s323
      %p327 = scmp.eq.s32.totalorder %s21, 0
      %p328 = por %p326, %p327
      %p329 = scmp.ne.s32.totalorder %s321, %s323
      %p330 = scmp.eq.s32.totalorder %s26, 7
      %p331 = por %p329, %p330
      %p332 = scmp.ne.s32.totalorder %s323, %s324
      %p333 = scmp.eq.s32.totalorder %s26, 0
      %p334 = por %p332, %p333
      %p335 = scmp.ne.s32.totalorder %s323, %s324
      %p336 = scmp.eq.s32.totalorder %s27, 7
      %p337 = por %p335, %p336
      %p339 = scmp.ne.s32.totalorder %s324, %s338
      %p340 = scmp.eq.s32.totalorder %s27, 0
      %p341 = por %p339, %p340
      %s343 = sadd.s32 %s342, 1
      %p346 = scmp.eq.s32.totalorder %s21, 7
      %p347 = scmp.ne.s32.totalorder %s342, %s344
      %p348 = scmp.eq.s32.totalorder %s21, 0
      %p349 = por %p347, %p348
      %p350 = scmp.ne.s32.totalorder %s342, %s344
      %p351 = scmp.eq.s32.totalorder %s26, 7
      %p352 = por %p350, %p351
      %p353 = scmp.ne.s32.totalorder %s344, %s345
      %p354 = scmp.eq.s32.totalorder %s26, 0
      %p355 = por %p353, %p354
      %p356 = scmp.ne.s32.totalorder %s344, %s345
      %p357 = scmp.eq.s32.totalorder %s27, 7
      %p358 = por %p356, %p357
      %p360 = scmp.ne.s32.totalorder %s345, %s359
      %p361 = scmp.eq.s32.totalorder %s27, 0
      %p362 = por %p360, %p361
      %p363 = scmp.le.s32.totalorder 1, %s21
      %p364 = scmp.lt.s32.totalorder %s21, 9
      %p365 = pnand %p363, %p364
      %p366 = pneg %p365
      // Predicated region
      $region9: #{cross_transformer.1} parent=5 // pred_check
        _
      $region10: #{cross_transformer.1} parent=5 // pred_check_branch
        %368 = sbr.rel (%p365) target = $region12
      $region11: #{cross_transformer.1} parent=5 // pred_region
        %s369 = ssub.s32 %s21, 1
      $region12: #{cross_transformer.1} parent=5 // pred_fallthru
        _
      %p370 = scmp.lt.s32.totalorder %s21, 8
      // Predicated region
      $region13: #{cross_transformer.1} parent=5 // pred_check
        %p371 = pneg %p370
      $region14: #{cross_transformer.1} parent=5 // pred_check_branch
        %373 = sbr.rel (%p371) target = $region16
      $region15: #{cross_transformer.1} parent=5 // pred_region
        // Predicated region
        $region17: #{cross_transformer.1} parent=15 // pred_check
          %p374 = pneg %p61
        $region18: #{cross_transformer.1} parent=15 // pred_check_branch
          %376 = sbr.rel (%p374) target = $region20
        $region19: #{cross_transformer.1} parent=15 // pred_region
          %s377 = sand.u32 %s51, 1
          %s378 = sand.u32 %s51, 1
          %s379 = smul.addr %s378, 32
          %s380 = scalar_lea.vmem [#allocation3], %s379
          %s381 = ssub.s32 1, %s28
          %s382 = smul.u32 %s29, %s381
          %s383 = smul.u32 %s28, 3
          %s384 = sadd.s32 %s382, %s383
          %s385 = smul.u32 2, %s384
          %s386 = smul.addr %s385, 8
          %s387 = scalar_lea.vmem %s0, %s386
          // Predicated region
          $region21: #{cross_transformer.1} parent=19 // pred_check
            _
          $region22: #{cross_transformer.1} parent=19 // pred_check_branch
            %389 = sbr.rel (0) target = $region24
          $region23: #{cross_transformer.1} parent=19 // pred_region
            // Predicated region
            $region25: #{cross_transformer.1} parent=23 // pred_check
              _
            $region26: #{cross_transformer.1} parent=23 // pred_check_branch
              %391 = sbr.rel (0) target = $region28
            $region27: #{cross_transformer.1} parent=23 // pred_region
              loop: start=0, step=1, limit=1
              $region29: #{cross_transformer.1} parent=27 // loop_pre_header
                _
              $region30: #{cross_transformer.1} parent=27 // loop_header
                %s393 = sphi 0, %s397
                %p394 = scmp.ge.s32.totalorder %s393, 1
                %s398 = sphi %s387, %s387
                %s399 = sphi %s380, %s380
              $region31: #{cross_transformer.1} parent=27 // loop_header_branch
                %396 = sbr.rel (%p394) target = $region35
              $region32: #{cross_transformer.1} parent=27 // loop_body
                %v400 = vld [vmem:[%s398] sm:$0xff]
                %401 = vst [vmem:[%s399] sm:$0xff] %v400
                %v402 = vld [vmem:[%s398 + $0x8] sm:$0xff]
                %403 = vst [vmem:[%s399 + $0x8] sm:$0xff] %v402
                %v404 = vld [vmem:[%s398 + $0x40] sm:$0xff]
                %405 = vst [vmem:[%s399 + $0x10] sm:$0xff] %v404
                %v406 = vld [vmem:[%s398 + $0x48] sm:$0xff]
                %407 = vst [vmem:[%s399 + $0x18] sm:$0xff] %v406
              $region33: #{cross_transformer.1} parent=27 // loop_footer
                %s397 = sadd.s32 1, %s393
              $region34: #{cross_transformer.1} parent=27 // loop_footer_branch
                %392 = sbr.rel target = $region30
              $region35: #{cross_transformer.1} parent=27 // loop_exit
                _
            $region28: #{cross_transformer.1} parent=23 // pred_fallthru
              _
            // Predicated region
            $region36: #{cross_transformer.1} parent=23 // pred_check
              _
            $region37: #{cross_transformer.1} parent=23 // pred_check_branch
              %409 = sbr.rel target = $region39
            $region38: #{cross_transformer.1} parent=23 // pred_region
              _
            $region39: #{cross_transformer.1} parent=23 // pred_fallthru
              _
          $region24: #{cross_transformer.1} parent=19 // pred_fallthru
            _
          %410 = vnop
        $region20: #{cross_transformer.1} parent=15 // pred_fallthru
          _
        // Predicated region
        $region40: #{cross_transformer.1} parent=15 // pred_check
          %p411 = pneg %p87
        $region41: #{cross_transformer.1} parent=15 // pred_check_branch
          %413 = sbr.rel (%p411) target = $region43
        $region42: #{cross_transformer.1} parent=15 // pred_region
          %s414 = sand.u32 %s77, 1
          %s415 = sand.u32 %s77, 1
          %s416 = smul.addr %s415, 64
          %s417 = scalar_lea.vmem [#allocation4], %s416
          %s418 = smul.u32 2, %s29
          %s419 = smul.addr %s418, 8
          %s420 = scalar_lea.vmem %s1, %s419
          // Predicated region
          $region44: #{cross_transformer.1} parent=42 // pred_check
            _
          $region45: #{cross_transformer.1} parent=42 // pred_check_branch
            %422 = sbr.rel (0) target = $region47
          $region46: #{cross_transformer.1} parent=42 // pred_region
            // Predicated region
            $region48: #{cross_transformer.1} parent=46 // pred_check
              _
            $region49: #{cross_transformer.1} parent=46 // pred_check_branch
              %424 = sbr.rel (0) target = $region51
            $region50: #{cross_transformer.1} parent=46 // pred_region
              loop: start=0, step=1, limit=1
              $region52: #{cross_transformer.1} parent=50 // loop_pre_header
                _
              $region53: #{cross_transformer.1} parent=50 // loop_header
                %s426 = sphi 0, %s430
                %p427 = scmp.ge.s32.totalorder %s426, 1
                %s431 = sphi %s420, %s420
                %s432 = sphi %s417, %s417
              $region54: #{cross_transformer.1} parent=50 // loop_header_branch
                %429 = sbr.rel (%p427) target = $region58
              $region55: #{cross_transformer.1} parent=50 // loop_body
                %v433 = vld [vmem:[%s431] sm:$0xff]
                %434 = vst [vmem:[%s432] sm:$0xff] %v433
                %v435 = vld [vmem:[%s431 + $0x8] sm:$0xff]
                %436 = vst [vmem:[%s432 + $0x8] sm:$0xff] %v435
                %v437 = vld [vmem:[%s431 + $0x40] sm:$0xff]
                %438 = vst [vmem:[%s432 + $0x10] sm:$0xff] %v437
                %v439 = vld [vmem:[%s431 + $0x48] sm:$0xff]
                %440 = vst [vmem:[%s432 + $0x18] sm:$0xff] %v439
                %v441 = vld [vmem:[%s431 + $0x80] sm:$0xff]
                %442 = vst [vmem:[%s432 + $0x20] sm:$0xff] %v441
                %v443 = vld [vmem:[%s431 + $0x88] sm:$0xff]
                %444 = vst [vmem:[%s432 + $0x28] sm:$0xff] %v443
                %v445 = vld [vmem:[%s431 + $0xc0] sm:$0xff]
                %446 = vst [vmem:[%s432 + $0x30] sm:$0xff] %v445
                %v447 = vld [vmem:[%s431 + $0xc8] sm:$0xff]
                %448 = vst [vmem:[%s432 + $0x38] sm:$0xff] %v447
              $region56: #{cross_transformer.1} parent=50 // loop_footer
                %s430 = sadd.s32 1, %s426
              $region57: #{cross_transformer.1} parent=50 // loop_footer_branch
                %425 = sbr.rel target = $region53
              $region58: #{cross_transformer.1} parent=50 // loop_exit
                _
            $region51: #{cross_transformer.1} parent=46 // pred_fallthru
              _
            // Predicated region
            $region59: #{cross_transformer.1} parent=46 // pred_check
              _
            $region60: #{cross_transformer.1} parent=46 // pred_check_branch
              %450 = sbr.rel target = $region62
            $region61: #{cross_transformer.1} parent=46 // pred_region
              _
            $region62: #{cross_transformer.1} parent=46 // pred_fallthru
              _
          $region47: #{cross_transformer.1} parent=42 // pred_fallthru
            _
          %451 = vnop
        $region43: #{cross_transformer.1} parent=15 // pred_fallthru
          _
        // Predicated region
        $region63: #{cross_transformer.1} parent=15 // pred_check
          %p452 = pneg %p115
        $region64: #{cross_transformer.1} parent=15 // pred_check_branch
          %454 = sbr.rel (%p452) target = $region66
        $region65: #{cross_transformer.1} parent=15 // pred_region
          %s455 = smul.u32 %s29, %s28
          %p456 = scmp.lt.s32.totalorder %s455, 3
          %s457 = scalar_select %p456, %s455, 3
          %s458 = smul.addr %s457, 64
          %s459 = smul.addr %s458, 4
          %s460 = scalar_lea.vmem %s2, %s459
          %s461 = smul.u32 %s29, %s28
        $region66: #{cross_transformer.1} parent=15 // pred_fallthru
          _
        // Predicated region
        $region67: #{cross_transformer.1} parent=15 // pred_check
          %p462 = pneg %p143
        $region68: #{cross_transformer.1} parent=15 // pred_check_branch
          %464 = sbr.rel (%p462) target = $region70
        $region69: #{cross_transformer.1} parent=15 // pred_region
          %s465 = smul.u32 %s29, %s28
          %s466 = smul.u32 2, %s465
          %p467 = scmp.lt.s32.totalorder %s466, 7
          %s468 = scalar_select %p467, %s466, 7
          %s469 = scalar_lea.vmem %s3, %s468
          %s470 = smul.u32 %s29, %s28
          %s471 = smul.u32 2, %s470
        $region70: #{cross_transformer.1} parent=15 // pred_fallthru
          _
        // Predicated region
        $region71: #{cross_transformer.1} parent=15 // pred_check
          %p472 = pneg %p177
        $region72: #{cross_transformer.1} parent=15 // pred_check_branch
          %474 = sbr.rel (%p472) target = $region74
        $region73: #{cross_transformer.1} parent=15 // pred_region
          %s475 = ssub.s32 1, %s28
          %s476 = smul.u32 %s29, %s475
          %s477 = smul.u32 %s28, 3
          %s478 = sadd.s32 %s476, %s477
          %p479 = scmp.lt.s32.totalorder %s478, 3
          %s480 = scalar_select %p479, %s478, 3
          %s481 = smul.addr %s480, 64
          %s482 = smul.addr %s481, 4
          %s483 = scalar_lea.vmem %s4, %s482
          %s484 = ssub.s32 1, %s28
          %s485 = smul.u32 %s29, %s484
          %s486 = smul.u32 %s28, 3
          %s487 = sadd.s32 %s485, %s486
        $region74: #{cross_transformer.1} parent=15 // pred_fallthru
          _
        // Predicated region
        $region75: #{cross_transformer.1} parent=15 // pred_check
          %p488 = pneg %p211
        $region76: #{cross_transformer.1} parent=15 // pred_check_branch
          %490 = sbr.rel (%p488) target = $region78
        $region77: #{cross_transformer.1} parent=15 // pred_region
          %s491 = ssub.s32 1, %s28
          %s492 = smul.u32 %s29, %s491
          %s493 = smul.u32 %s28, 3
          %s494 = sadd.s32 %s492, %s493
          %s495 = smul.u32 2, %s494
          %p496 = scmp.lt.s32.totalorder %s495, 7
          %s497 = scalar_select %p496, %s495, 7
          %s498 = scalar_lea.vmem %s5, %s497
          %s499 = ssub.s32 1, %s28
          %s500 = smul.u32 %s29, %s499
          %s501 = smul.u32 %s28, 3
          %s502 = sadd.s32 %s500, %s501
          %s503 = smul.u32 2, %s502
        $region78: #{cross_transformer.1} parent=15 // pred_fallthru
          _
        // Predicated region
        $region79: #{cross_transformer.1} parent=15 // pred_check
          %p504 = pneg %p245
        $region80: #{cross_transformer.1} parent=15 // pred_check_branch
          %506 = sbr.rel (%p504) target = $region82
        $region81: #{cross_transformer.1} parent=15 // pred_region
          %s507 = ssub.s32 1, %s28
          %s508 = smul.u32 %s29, %s507
          %s509 = smul.u32 %s28, 3
          %s510 = sadd.s32 %s508, %s509
          %p511 = scmp.lt.s32.totalorder %s510, 3
          %s512 = scalar_select %p511, %s510, 3
          %s513 = smul.addr %s512, 64
          %s514 = smul.addr %s513, 4
          %s515 = scalar_lea.vmem %s6, %s514
          %s516 = ssub.s32 1, %s28
          %s517 = smul.u32 %s29, %s516
          %s518 = smul.u32 %s28, 3
          %s519 = sadd.s32 %s517, %s518
        $region82: #{cross_transformer.1} parent=15 // pred_fallthru
          _
        // Predicated region
        $region83: #{cross_transformer.1} parent=15 // pred_check
          %p520 = pneg %p279
        $region84: #{cross_transformer.1} parent=15 // pred_check_branch
          %522 = sbr.rel (%p520) target = $region86
        $region85: #{cross_transformer.1} parent=15 // pred_region
          %s523 = ssub.s32 1, %s28
          %s524 = smul.u32 %s29, %s523
          %s525 = smul.u32 %s28, 3
          %s526 = sadd.s32 %s524, %s525
          %s527 = smul.u32 2, %s526
          %p528 = scmp.lt.s32.totalorder %s527, 7
          %s529 = scalar_select %p528, %s527, 7
          %s530 = scalar_lea.vmem %s7, %s529
          %s531 = ssub.s32 1, %s28
          %s532 = smul.u32 %s29, %s531
          %s533 = smul.u32 %s28, 3
          %s534 = sadd.s32 %s532, %s533
          %s535 = smul.u32 2, %s534
        $region86: #{cross_transformer.1} parent=15 // pred_fallthru
          _
      $region16: #{cross_transformer.1} parent=5 // pred_fallthru
        _
      %p536 = scmp.le.s32.totalorder 1, %s21
      %p537 = scmp.lt.s32.totalorder %s21, 9
      %p538 = pnand %p536, %p537
      %p539 = pneg %p538
      // Predicated region
      $region87: #{cross_transformer.1} parent=5 // pred_check
        _
      $region88: #{cross_transformer.1} parent=5 // pred_check_branch
        %541 = sbr.rel (%p538) target = $region90
      $region89: #{cross_transformer.1} parent=5 // pred_region
        %s542 = ssub.s32 %s21, 1
        %s543 = sand.u32 %s54, 1
        %s544 = sand.u32 %s54, 1
        %s545 = smul.addr %s544, 32
        %s546 = scalar_lea.vmem [#allocation3], %s545
        // Predicated region
        $region91: #{cross_transformer.1} parent=89 // pred_check
          %p547 = pneg %p67
        $region92: #{cross_transformer.1} parent=89 // pred_check_branch
          %549 = sbr.rel (%p547) target = $region94
        $region93: #{cross_transformer.1} parent=89 // pred_region
          _
        $region94: #{cross_transformer.1} parent=89 // pred_fallthru
          _
        %s550 = sand.u32 %s80, 1
        %s551 = sand.u32 %s80, 1
        %s552 = smul.addr %s551, 64
        %s553 = scalar_lea.vmem [#allocation4], %s552
        // Predicated region
        $region95: #{cross_transformer.1} parent=89 // pred_check
          %p554 = pneg %p93
        $region96: #{cross_transformer.1} parent=89 // pred_check_branch
          %556 = sbr.rel (%p554) target = $region98
        $region97: #{cross_transformer.1} parent=89 // pred_region
          _
        $region98: #{cross_transformer.1} parent=89 // pred_fallthru
          _
        %s557 = sand.u32 %s54, 1
        %s558 = sand.u32 %s54, 1
        %s559 = smul.addr %s558, 32
        %s560 = scalar_lea.vmem [#allocation3], %s559
        %p561 = pneg %p67
        %p562 = pneg %p64
        %s563 = sand.u32 %s80, 1
        %s564 = sand.u32 %s80, 1
        %s565 = smul.addr %s564, 64
        %s566 = scalar_lea.vmem [#allocation4], %s565
        %p567 = pneg %p93
        %p568 = pneg %p90
        %s569 = smul.u32 %s31, %s30
        %p570 = scmp.lt.s32.totalorder %s569, 3
        %s571 = scalar_select %p570, %s569, 3
        %s572 = smul.addr %s571, 64
        %s573 = smul.addr %s572, 4
        %s574 = scalar_lea.vmem %s2, %s573
        %p575 = pneg %p121
        %p576 = pneg %p118
        %s577 = smul.u32 %s31, %s30
        %s578 = smul.u32 2, %s577
        %p579 = scmp.lt.s32.totalorder %s578, 7
        %s580 = scalar_select %p579, %s578, 7
        %s581 = scalar_lea.vmem %s3, %s580
        %p582 = pneg %p149
        %p583 = pneg %p146
        %s584 = ssub.s32 1, %s30
        %s585 = smul.u32 %s31, %s584
        %s586 = smul.u32 %s30, 3
        %s587 = sadd.s32 %s585, %s586
        %p588 = scmp.lt.s32.totalorder %s587, 3
        %s589 = scalar_select %p588, %s587, 3
        %s590 = smul.addr %s589, 64
        %s591 = smul.addr %s590, 4
        %s592 = scalar_lea.vmem %s4, %s591
        %p593 = pneg %p183
        %p594 = pneg %p180
        %s595 = ssub.s32 1, %s30
        %s596 = smul.u32 %s31, %s595
        %s597 = smul.u32 %s30, 3
        %s598 = sadd.s32 %s596, %s597
        %s599 = smul.u32 2, %s598
        %p600 = scmp.lt.s32.totalorder %s599, 7
        %s601 = scalar_select %p600, %s599, 7
        %s602 = scalar_lea.vmem %s5, %s601
        %p603 = pneg %p217
        %p604 = pneg %p214
        %s605 = ssub.s32 1, %s30
        %s606 = smul.u32 %s31, %s605
        %s607 = smul.u32 %s30, 3
        %s608 = sadd.s32 %s606, %s607
        %p609 = scmp.lt.s32.totalorder %s608, 3
        %s610 = scalar_select %p609, %s608, 3
        %s611 = smul.addr %s610, 64
        %s612 = smul.addr %s611, 4
        %s613 = scalar_lea.vmem %s6, %s612
        %p614 = pneg %p251
        %p615 = pneg %p248
        %s616 = ssub.s32 1, %s30
        %s617 = smul.u32 %s31, %s616
        %s618 = smul.u32 %s30, 3
        %s619 = sadd.s32 %s617, %s618
        %s620 = smul.u32 2, %s619
        %p621 = scmp.lt.s32.totalorder %s620, 7
        %s622 = scalar_select %p621, %s620, 7
        %s623 = scalar_lea.vmem %s7, %s622
        %p624 = pneg %p285
        %p625 = pneg %p282
        %p626 = pneg %p313
        %p627 = pneg %p310
        %s628 = sand.u32 %s300, 1
        %s629 = scalar_lea.sflag [#allocation6], %s628
        %s630 = sand.u32 %s300, 1
        %s631 = smul.addr %s630, 32
        %s632 = scalar_lea.vmem [#allocation5], %s631
        %p633 = pneg %p334
        %p634 = pneg %p331
        %p635 = pneg %p355
        %p636 = pneg %p352
        %s637 = ssub.s32 1, %s30
        %s638 = smul.u32 %s31, %s637
        %s639 = smul.u32 %s30, 3
        %s640 = sadd.s32 %s638, %s639
        %s641 = smul.u32 2, %s640
        %s642 = smul.u32 2, %s31
        %s643 = smul.u32 %s31, %s30
        %p644 = scmp.lt.s32.totalorder %s643, 3
        %s645 = scalar_select %p644, %s643, 3
        %s646 = smul.addr %s645, 64
        %s647 = smul.addr %s646, 4
        %s648 = scalar_lea.vmem %s2, %s647
        %s649 = smul.u32 %s31, %s30
        %s650 = smul.u32 %s31, %s30
        %s651 = smul.u32 2, %s650
        %p652 = scmp.lt.s32.totalorder %s651, 7
        %s653 = scalar_select %p652, %s651, 7
        %s654 = scalar_lea.vmem %s3, %s653
        %s655 = smul.u32 %s31, %s30
        %s656 = smul.u32 2, %s655
        %s657 = ssub.s32 1, %s30
        %s658 = smul.u32 %s31, %s657
        %s659 = smul.u32 %s30, 3
        %s660 = sadd.s32 %s658, %s659
        %p661 = scmp.lt.s32.totalorder %s660, 3
        %s662 = scalar_select %p661, %s660, 3
        %s663 = smul.addr %s662, 64
        %s664 = smul.addr %s663, 4
        %s665 = scalar_lea.vmem %s4, %s664
        %s666 = ssub.s32 1, %s30
        %s667 = smul.u32 %s31, %s666
        %s668 = smul.u32 %s30, 3
        %s669 = sadd.s32 %s667, %s668
        %s670 = ssub.s32 1, %s30
        %s671 = smul.u32 %s31, %s670
        %s672 = smul.u32 %s30, 3
        %s673 = sadd.s32 %s671, %s672
        %s674 = smul.u32 2, %s673
        %p675 = scmp.lt.s32.totalorder %s674, 7
        %s676 = scalar_select %p675, %s674, 7
        %s677 = scalar_lea.vmem %s5, %s676
        %s678 = ssub.s32 1, %s30
        %s679 = smul.u32 %s31, %s678
        %s680 = smul.u32 %s30, 3
        %s681 = sadd.s32 %s679, %s680
        %s682 = smul.u32 2, %s681
        %s683 = ssub.s32 1, %s30
        %s684 = smul.u32 %s31, %s683
        %s685 = smul.u32 %s30, 3
        %s686 = sadd.s32 %s684, %s685
        %p687 = scmp.lt.s32.totalorder %s686, 3
        %s688 = scalar_select %p687, %s686, 3
        %s689 = smul.addr %s688, 64
        %s690 = smul.addr %s689, 4
        %s691 = scalar_lea.vmem %s6, %s690
        %s692 = ssub.s32 1, %s30
        %s693 = smul.u32 %s31, %s692
        %s694 = smul.u32 %s30, 3
        %s695 = sadd.s32 %s693, %s694
        %s696 = ssub.s32 1, %s30
        %s697 = smul.u32 %s31, %s696
        %s698 = smul.u32 %s30, 3
        %s699 = sadd.s32 %s697, %s698
        %s700 = smul.u32 2, %s699
        %p701 = scmp.lt.s32.totalorder %s700, 7
        %s702 = scalar_select %p701, %s700, 7
        %s703 = scalar_lea.vmem %s7, %s702
        %s704 = ssub.s32 1, %s30
        %s705 = smul.u32 %s31, %s704
        %s706 = smul.u32 %s30, 3
        %s707 = sadd.s32 %s705, %s706
        %s708 = smul.u32 2, %s707
        %s709 = smul.u32 %s31, %s30
        %s710 = smul.u32 2, %s709
        %p711 = scmp.eq.s32.totalorder %s30, 0
        %p712 = scmp.eq.s32.totalorder %s31, 0
        %p713 = pnand %p711, %p712
        %p714 = pneg %p713
        // Predicated region
        $region99: #{cross_transformer.1} parent=89 // pred_check
          _
        $region100: #{cross_transformer.1} parent=89 // pred_check_branch
          %716 = sbr.rel (%p713) target = $region102
        $region101: #{cross_transformer.1} parent=89 // pred_region
          %vm717 = vcmask 130048
          %718 = vst.msk [vmem:[#allocation2] sm:$0xff] %vm717, 0.0
          %719 = vst.msk [vmem:[#allocation2 + $0x8] sm:$0xff] %vm717, 0.0
        $region102: #{cross_transformer.1} parent=89 // pred_fallthru
          _
        // Predicated region
        $region103: #{cross_transformer.1} parent=89 // pred_check
          %p720 = pneg %p711
        $region104: #{cross_transformer.1} parent=89 // pred_check_branch
          %722 = sbr.rel (%p720) target = $region106
        $region105: #{cross_transformer.1} parent=89 // pred_region
          %v723 = vld [vmem:[%s665] sm:$0xff]
          %v724 = vld [vmem:[%s665 + $0x8] sm:$0xff]
          %v725 = vld [vmem:[%s665 + $0x10] sm:$0xff]
          %v726 = vld [vmem:[%s665 + $0x18] sm:$0xff]
          %v727 = vld [vmem:[%s665 + $0x20] sm:$0xff]
          %v728 = vld [vmem:[%s665 + $0x28] sm:$0xff]
          %v729 = vld [vmem:[%s665 + $0x30] sm:$0xff]
          %v730 = vld [vmem:[%s665 + $0x38] sm:$0xff]
          %v731 = vld [vmem:[%s665 + $0x40] sm:$0xff]
          %v732 = vld [vmem:[%s665 + $0x48] sm:$0xff]
          %v733 = vld [vmem:[%s665 + $0x50] sm:$0xff]
          %v734 = vld [vmem:[%s665 + $0x58] sm:$0xff]
          %v735 = vld [vmem:[%s665 + $0x60] sm:$0xff]
          %v736 = vld [vmem:[%s665 + $0x68] sm:$0xff]
          %v737 = vld [vmem:[%s665 + $0x70] sm:$0xff]
          %v738 = vld [vmem:[%s665 + $0x78] sm:$0xff]
          %v739 = vld [vmem:[%s665 + $0x80] sm:$0xff]
          %v740 = vld [vmem:[%s665 + $0x88] sm:$0xff]
          %v741 = vld [vmem:[%s665 + $0x90] sm:$0xff]
          %v742 = vld [vmem:[%s665 + $0x98] sm:$0xff]
          %v743 = vld [vmem:[%s665 + $0xa0] sm:$0xff]
          %v744 = vld [vmem:[%s665 + $0xa8] sm:$0xff]
          %v745 = vld [vmem:[%s665 + $0xb0] sm:$0xff]
          %v746 = vld [vmem:[%s665 + $0xb8] sm:$0xff]
          %v747 = vld [vmem:[%s665 + $0xc0] sm:$0xff]
          %v748 = vld [vmem:[%s665 + $0xc8] sm:$0xff]
          %v749 = vld [vmem:[%s665 + $0xd0] sm:$0xff]
          %v750 = vld [vmem:[%s665 + $0xd8] sm:$0xff]
          %v751 = vld [vmem:[%s665 + $0xe0] sm:$0xff]
          %v752 = vld [vmem:[%s665 + $0xe8] sm:$0xff]
          %v753 = vld [vmem:[%s665 + $0xf0] sm:$0xff]
          %v754 = vld [vmem:[%s665 + $0xf8] sm:$0xff]
          %v755 = vunpack.c.l.bf16 %v723
          %v756 = vunpack.c.h.bf16 %v723
          %v757 = vunpack.c.l.bf16 %v724
          %v758 = vunpack.c.h.bf16 %v724
          %v759 = vunpack.c.l.bf16 %v725
          %v760 = vunpack.c.h.bf16 %v725
          %v761 = vunpack.c.l.bf16 %v726
          %v762 = vunpack.c.h.bf16 %v726
          %v763 = vunpack.c.l.bf16 %v727
          %v764 = vunpack.c.h.bf16 %v727
          %v765 = vunpack.c.l.bf16 %v728
          %v766 = vunpack.c.h.bf16 %v728
          %v767 = vunpack.c.l.bf16 %v729
          %v768 = vunpack.c.h.bf16 %v729
          %v769 = vunpack.c.l.bf16 %v730
          %v770 = vunpack.c.h.bf16 %v730
          %v771 = vunpack.c.l.bf16 %v731
          %v772 = vunpack.c.h.bf16 %v731
          %v773 = vunpack.c.l.bf16 %v732
          %v774 = vunpack.c.h.bf16 %v732
          %v775 = vunpack.c.l.bf16 %v733
          %v776 = vunpack.c.h.bf16 %v733
          %v777 = vunpack.c.l.bf16 %v734
          %v778 = vunpack.c.h.bf16 %v734
          %v779 = vunpack.c.l.bf16 %v735
          %v780 = vunpack.c.h.bf16 %v735
          %v781 = vunpack.c.l.bf16 %v736
          %v782 = vunpack.c.h.bf16 %v736
          %v783 = vunpack.c.l.bf16 %v737
          %v784 = vunpack.c.h.bf16 %v737
          %v785 = vunpack.c.l.bf16 %v738
          %v786 = vunpack.c.h.bf16 %v738
          %v787 = vunpack.c.l.bf16 %v739
          %v788 = vunpack.c.h.bf16 %v739
          %v789 = vunpack.c.l.bf16 %v740
          %v790 = vunpack.c.h.bf16 %v740
          %v791 = vunpack.c.l.bf16 %v741
          %v792 = vunpack.c.h.bf16 %v741
          %v793 = vunpack.c.l.bf16 %v742
          %v794 = vunpack.c.h.bf16 %v742
          %v795 = vunpack.c.l.bf16 %v743
          %v796 = vunpack.c.h.bf16 %v743
          %v797 = vunpack.c.l.bf16 %v744
          %v798 = vunpack.c.h.bf16 %v744
          %v799 = vunpack.c.l.bf16 %v745
          %v800 = vunpack.c.h.bf16 %v745
          %v801 = vunpack.c.l.bf16 %v746
          %v802 = vunpack.c.h.bf16 %v746
          %v803 = vunpack.c.l.bf16 %v747
          %v804 = vunpack.c.h.bf16 %v747
          %v805 = vunpack.c.l.bf16 %v748
          %v806 = vunpack.c.h.bf16 %v748
          %v807 = vunpack.c.l.bf16 %v749
          %v808 = vunpack.c.h.bf16 %v749
          %v809 = vunpack.c.l.bf16 %v750
          %v810 = vunpack.c.h.bf16 %v750
          %v811 = vunpack.c.l.bf16 %v751
          %v812 = vunpack.c.h.bf16 %v751
          %v813 = vunpack.c.l.bf16 %v752
          %v814 = vunpack.c.h.bf16 %v752
          %v815 = vunpack.c.l.bf16 %v753
          %v816 = vunpack.c.h.bf16 %v753
          %v817 = vunpack.c.l.bf16 %v754
          %v818 = vunpack.c.h.bf16 %v754
          %v819 = vld [vmem:[%s691] sm:$0xff]
          %v820 = vld [vmem:[%s691 + $0x8] sm:$0xff]
          %v821 = vld [vmem:[%s691 + $0x10] sm:$0xff]
          %v822 = vld [vmem:[%s691 + $0x18] sm:$0xff]
          %v823 = vld [vmem:[%s691 + $0x20] sm:$0xff]
          %v824 = vld [vmem:[%s691 + $0x28] sm:$0xff]
          %v825 = vld [vmem:[%s691 + $0x30] sm:$0xff]
          %v826 = vld [vmem:[%s691 + $0x38] sm:$0xff]
          %v827 = vld [vmem:[%s691 + $0x40] sm:$0xff]
          %v828 = vld [vmem:[%s691 + $0x48] sm:$0xff]
          %v829 = vld [vmem:[%s691 + $0x50] sm:$0xff]
          %v830 = vld [vmem:[%s691 + $0x58] sm:$0xff]
          %v831 = vld [vmem:[%s691 + $0x60] sm:$0xff]
          %v832 = vld [vmem:[%s691 + $0x68] sm:$0xff]
          %v833 = vld [vmem:[%s691 + $0x70] sm:$0xff]
          %v834 = vld [vmem:[%s691 + $0x78] sm:$0xff]
          %v835 = vld [vmem:[%s691 + $0x80] sm:$0xff]
          %v836 = vld [vmem:[%s691 + $0x88] sm:$0xff]
          %v837 = vld [vmem:[%s691 + $0x90] sm:$0xff]
          %v838 = vld [vmem:[%s691 + $0x98] sm:$0xff]
          %v839 = vld [vmem:[%s691 + $0xa0] sm:$0xff]
          %v840 = vld [vmem:[%s691 + $0xa8] sm:$0xff]
          %v841 = vld [vmem:[%s691 + $0xb0] sm:$0xff]
          %v842 = vld [vmem:[%s691 + $0xb8] sm:$0xff]
          %v843 = vld [vmem:[%s691 + $0xc0] sm:$0xff]
          %v844 = vld [vmem:[%s691 + $0xc8] sm:$0xff]
          %v845 = vld [vmem:[%s691 + $0xd0] sm:$0xff]
          %v846 = vld [vmem:[%s691 + $0xd8] sm:$0xff]
          %v847 = vld [vmem:[%s691 + $0xe0] sm:$0xff]
          %v848 = vld [vmem:[%s691 + $0xe8] sm:$0xff]
          %v849 = vld [vmem:[%s691 + $0xf0] sm:$0xff]
          %v850 = vld [vmem:[%s691 + $0xf8] sm:$0xff]
          %v851 = vunpack.c.l.bf16 %v819
          %v852 = vunpack.c.h.bf16 %v819
          %v853 = vunpack.c.l.bf16 %v820
          %v854 = vunpack.c.h.bf16 %v820
          %v855 = vunpack.c.l.bf16 %v821
          %v856 = vunpack.c.h.bf16 %v821
          %v857 = vunpack.c.l.bf16 %v822
          %v858 = vunpack.c.h.bf16 %v822
          %v859 = vunpack.c.l.bf16 %v823
          %v860 = vunpack.c.h.bf16 %v823
          %v861 = vunpack.c.l.bf16 %v824
          %v862 = vunpack.c.h.bf16 %v824
          %v863 = vunpack.c.l.bf16 %v825
          %v864 = vunpack.c.h.bf16 %v825
          %v865 = vunpack.c.l.bf16 %v826
          %v866 = vunpack.c.h.bf16 %v826
          %v867 = vunpack.c.l.bf16 %v827
          %v868 = vunpack.c.h.bf16 %v827
          %v869 = vunpack.c.l.bf16 %v828
          %v870 = vunpack.c.h.bf16 %v828
          %v871 = vunpack.c.l.bf16 %v829
          %v872 = vunpack.c.h.bf16 %v829
          %v873 = vunpack.c.l.bf16 %v830
          %v874 = vunpack.c.h.bf16 %v830
          %v875 = vunpack.c.l.bf16 %v831
          %v876 = vunpack.c.h.bf16 %v831
          %v877 = vunpack.c.l.bf16 %v832
          %v878 = vunpack.c.h.bf16 %v832
          %v879 = vunpack.c.l.bf16 %v833
          %v880 = vunpack.c.h.bf16 %v833
          %v881 = vunpack.c.l.bf16 %v834
          %v882 = vunpack.c.h.bf16 %v834
          %v883 = vunpack.c.l.bf16 %v835
          %v884 = vunpack.c.h.bf16 %v835
          %v885 = vunpack.c.l.bf16 %v836
          %v886 = vunpack.c.h.bf16 %v836
          %v887 = vunpack.c.l.bf16 %v837
          %v888 = vunpack.c.h.bf16 %v837
          %v889 = vunpack.c.l.bf16 %v838
          %v890 = vunpack.c.h.bf16 %v838
          %v891 = vunpack.c.l.bf16 %v839
          %v892 = vunpack.c.h.bf16 %v839
          %v893 = vunpack.c.l.bf16 %v840
          %v894 = vunpack.c.h.bf16 %v840
          %v895 = vunpack.c.l.bf16 %v841
          %v896 = vunpack.c.h.bf16 %v841
          %v897 = vunpack.c.l.bf16 %v842
          %v898 = vunpack.c.h.bf16 %v842
          %v899 = vunpack.c.l.bf16 %v843
          %v900 = vunpack.c.h.bf16 %v843
          %v901 = vunpack.c.l.bf16 %v844
          %v902 = vunpack.c.h.bf16 %v844
          %v903 = vunpack.c.l.bf16 %v845
          %v904 = vunpack.c.h.bf16 %v845
          %v905 = vunpack.c.l.bf16 %v846
          %v906 = vunpack.c.h.bf16 %v846
          %v907 = vunpack.c.l.bf16 %v847
          %v908 = vunpack.c.h.bf16 %v847
          %v909 = vunpack.c.l.bf16 %v848
          %v910 = vunpack.c.h.bf16 %v848
          %v911 = vunpack.c.l.bf16 %v849
          %v912 = vunpack.c.h.bf16 %v849
          %v913 = vunpack.c.l.bf16 %v850
          %v914 = vunpack.c.h.bf16 %v850
          %v915 = vld [vmem:[%s553] sm:$0xff]
          %v916 = vld [vmem:[%s553 + $0x8] sm:$0xff]
          %v917 = vld [vmem:[%s553 + $0x10] sm:$0xff]
          %v918 = vld [vmem:[%s553 + $0x18] sm:$0xff]
          %v919 = vld [vmem:[%s553 + $0x20] sm:$0xff]
          %v920 = vld [vmem:[%s553 + $0x28] sm:$0xff]
          %v921 = vld [vmem:[%s553 + $0x30] sm:$0xff]
          %v922 = vld [vmem:[%s553 + $0x38] sm:$0xff]
          %v923 = vld [vmem:[%s677] sm:$0x3]
          %v925 = vlaneseq
          %v926 = vshrl.u32 %v925, 7
          %v927 = vsub.s32 0, %v926
          %v928 = vrot.slane %v923, %v927
          %v929 = vlaneseq
          %v930 = vshrl.u32 %v929, 7
          %v931 = vsub.s32 1, %v930
          %v932 = vrot.slane %v923, %v931
          %935 = vmatprep.subr.mxu0 %v786
          %936 = vmatpush1.msra.mxu0 %v785
          %937 = vmatprep.subr.mxu0 %v784
          %938 = vmatpush1.msra.mxu0 %v783
          %939 = vmatprep.subr.mxu0 %v782
          %940 = vmatpush1.msra.mxu0 %v781
          %941 = vmatprep.subr.mxu0 %v780
          %942 = vmatpush1.msra.mxu0 %v779
          %943 = vmatprep.subr.mxu0 %v778
          %944 = vmatpush1.msra.mxu0 %v777
          %945 = vmatprep.subr.mxu0 %v776
          %946 = vmatpush1.msra.mxu0 %v775
          %947 = vmatprep.subr.mxu0 %v774
          %948 = vmatpush1.msra.mxu0 %v773
          %949 = vmatprep.subr.mxu0 %v772
          %950 = vmatpush1.msra.mxu0 %v771
          %951 = vmatprep.subr.mxu0 %v770
          %952 = vmatpush1.msra.mxu0 %v769
          %953 = vmatprep.subr.mxu0 %v768
          %954 = vmatpush1.msra.mxu0 %v767
          %955 = vmatprep.subr.mxu0 %v766
          %956 = vmatpush1.msra.mxu0 %v765
          %957 = vmatprep.subr.mxu0 %v764
          %958 = vmatpush1.msra.mxu0 %v763
          %959 = vmatprep.subr.mxu0 %v762
          %960 = vmatpush1.msra.mxu0 %v761
          %961 = vmatprep.subr.mxu0 %v760
          %962 = vmatpush1.msra.mxu0 %v759
          %963 = vmatprep.subr.mxu0 %v758
          %964 = vmatpush1.msra.mxu0 %v757
          %965 = vmatprep.subr.mxu0 %v756
          %966 = vmatpush1.msra.mxu0 %v755
          %967 = vmatprep.subr.mxu0 %v818
          %968 = vmatpush2.msra.mxu0 %v817
          %969 = vmatprep.subr.mxu0 %v816
          %970 = vmatpush2.msra.mxu0 %v815
          %971 = vmatprep.subr.mxu0 %v814
          %972 = vmatpush2.msra.mxu0 %v813
          %973 = vmatprep.subr.mxu0 %v812
          %974 = vmatpush2.msra.mxu0 %v811
          %975 = vmatprep.subr.mxu0 %v810
          %976 = vmatpush2.msra.mxu0 %v809
          %977 = vmatprep.subr.mxu0 %v808
          %978 = vmatpush2.msra.mxu0 %v807
          %979 = vmatprep.subr.mxu0 %v806
          %980 = vmatpush2.msra.mxu0 %v805
          %981 = vmatprep.subr.mxu0 %v804
          %982 = vmatpush2.msra.mxu0 %v803
          %983 = vmatprep.subr.mxu0 %v802
          %984 = vmatpush2.msra.mxu0 %v801
          %985 = vmatprep.subr.mxu0 %v800
          %986 = vmatpush2.msra.mxu0 %v799
          %987 = vmatprep.subr.mxu0 %v798
          %988 = vmatpush2.msra.mxu0 %v797
          %989 = vmatprep.subr.mxu0 %v796
          %990 = vmatpush2.msra.mxu0 %v795
          %991 = vmatprep.subr.mxu0 %v794
          %992 = vmatpush2.msra.mxu0 %v793
          %993 = vmatprep.subr.mxu0 %v792
          %994 = vmatpush2.msra.mxu0 %v791
          %995 = vmatprep.subr.mxu0 %v790
          %996 = vmatpush2.msra.mxu0 %v789
          %997 = vmatprep.subr.mxu0 %v788
          %998 = vmatpush2.msra.mxu0 %v787
          %999 = vmatprep.mubr.f32.mxu0 %v916
          %1000 = vmatmul.mubr.f32.gmra.mxu0 %v915
          %v1001 = vpop.f32.mrf.mxu0
          %v1002 = vadd.f32 %v928, %v1001
          %v1003 = vpop.f32.mrf.mxu0
          %v1004 = vadd.f32 %v932, %v1003
          %1005 = vmatprep.mubr.f32.mxu0 %v918
          %1006 = vmatmul.mubr.f32.gmra.mxu0 %v917
          %v1007 = vpop.f32.mrf.mxu0
          %v1008 = vadd.f32 %v928, %v1007
          %v1009 = vpop.f32.mrf.mxu0
          %v1010 = vadd.f32 %v932, %v1009
          %1011 = vmatprep.mubr.f32.mxu0 %v920
          %1012 = vmatmul.mubr.f32.gmra.mxu0 %v919
          %v1013 = vpop.f32.mrf.mxu0
          %v1014 = vadd.f32 %v928, %v1013
          %v1015 = vpop.f32.mrf.mxu0
          %v1016 = vadd.f32 %v932, %v1015
          %1017 = vmatprep.mubr.f32.mxu0 %v922
          %1018 = vmatmul.mubr.f32.gmra.mxu0 %v921
          %v1019 = vpop.f32.mrf.mxu0
          %v1020 = vadd.f32 %v928, %v1019
          %v1021 = vpop.f32.mrf.mxu0
          %v1022 = vadd.f32 %v932, %v1021
          %1023 = vdwg.mxu0
          %v1024 = vld [vmem:[%s546] sm:$0xff]
          %v1025 = vld [vmem:[%s546 + $0x8] sm:$0xff]
          %v1026 = vld [vmem:[%s546 + $0x10] sm:$0xff]
          %v1027 = vld [vmem:[%s546 + $0x18] sm:$0xff]
          %v1028 = vld [vmem:[%s703] sm:$0x3]
          %v1030 = vlaneseq
          %v1031 = vshrl.u32 %v1030, 7
          %v1032 = vsub.s32 0, %v1031
          %v1033 = vrot.slane %v1028, %v1032
          %v1034 = vlaneseq
          %v1035 = vshrl.u32 %v1034, 7
          %v1036 = vsub.s32 1, %v1035
          %v1037 = vrot.slane %v1028, %v1036
          %1040 = vmatprep.subr.mxu0 %v882
          %1041 = vmatpush1.msra.mxu0 %v881
          %1042 = vmatprep.subr.mxu0 %v880
          %1043 = vmatpush1.msra.mxu0 %v879
          %1044 = vmatprep.subr.mxu0 %v878
          %1045 = vmatpush1.msra.mxu0 %v877
          %1046 = vmatprep.subr.mxu0 %v876
          %1047 = vmatpush1.msra.mxu0 %v875
          %1048 = vmatprep.subr.mxu0 %v874
          %1049 = vmatpush1.msra.mxu0 %v873
          %1050 = vmatprep.subr.mxu0 %v872
          %1051 = vmatpush1.msra.mxu0 %v871
          %1052 = vmatprep.subr.mxu0 %v870
          %1053 = vmatpush1.msra.mxu0 %v869
          %1054 = vmatprep.subr.mxu0 %v868
          %1055 = vmatpush1.msra.mxu0 %v867
          %1056 = vmatprep.subr.mxu0 %v866
          %1057 = vmatpush1.msra.mxu0 %v865
          %1058 = vmatprep.subr.mxu0 %v864
          %1059 = vmatpush1.msra.mxu0 %v863
          %1060 = vmatprep.subr.mxu0 %v862
          %1061 = vmatpush1.msra.mxu0 %v861
          %1062 = vmatprep.subr.mxu0 %v860
          %1063 = vmatpush1.msra.mxu0 %v859
          %1064 = vmatprep.subr.mxu0 %v858
          %1065 = vmatpush1.msra.mxu0 %v857
          %1066 = vmatprep.subr.mxu0 %v856
          %1067 = vmatpush1.msra.mxu0 %v855
          %1068 = vmatprep.subr.mxu0 %v854
          %1069 = vmatpush1.msra.mxu0 %v853
          %1070 = vmatprep.subr.mxu0 %v852
          %1071 = vmatpush1.msra.mxu0 %v851
          %1072 = vmatprep.subr.mxu0 %v914
          %1073 = vmatpush2.msra.mxu0 %v913
          %1074 = vmatprep.subr.mxu0 %v912
          %1075 = vmatpush2.msra.mxu0 %v911
          %1076 = vmatprep.subr.mxu0 %v910
          %1077 = vmatpush2.msra.mxu0 %v909
          %1078 = vmatprep.subr.mxu0 %v908
          %1079 = vmatpush2.msra.mxu0 %v907
          %1080 = vmatprep.subr.mxu0 %v906
          %1081 = vmatpush2.msra.mxu0 %v905
          %1082 = vmatprep.subr.mxu0 %v904
          %1083 = vmatpush2.msra.mxu0 %v903
          %1084 = vmatprep.subr.mxu0 %v902
          %1085 = vmatpush2.msra.mxu0 %v901
          %1086 = vmatprep.subr.mxu0 %v900
          %1087 = vmatpush2.msra.mxu0 %v899
          %1088 = vmatprep.subr.mxu0 %v898
          %1089 = vmatpush2.msra.mxu0 %v897
          %1090 = vmatprep.subr.mxu0 %v896
          %1091 = vmatpush2.msra.mxu0 %v895
          %1092 = vmatprep.subr.mxu0 %v894
          %1093 = vmatpush2.msra.mxu0 %v893
          %1094 = vmatprep.subr.mxu0 %v892
          %1095 = vmatpush2.msra.mxu0 %v891
          %1096 = vmatprep.subr.mxu0 %v890
          %1097 = vmatpush2.msra.mxu0 %v889
          %1098 = vmatprep.subr.mxu0 %v888
          %1099 = vmatpush2.msra.mxu0 %v887
          %1100 = vmatprep.subr.mxu0 %v886
          %1101 = vmatpush2.msra.mxu0 %v885
          %1102 = vmatprep.subr.mxu0 %v884
          %1103 = vmatpush2.msra.mxu0 %v883
          %1104 = vmatprep.mubr.f32.mxu0 %v1025
          %1105 = vmatmul.mubr.f32.gmra.mxu0 %v1024
          %v1106 = vpop.f32.mrf.mxu0
          %v1107 = vadd.f32 %v1033, %v1106
          %v1108 = vpop.f32.mrf.mxu0
          %v1109 = vadd.f32 %v1037, %v1108
          %1110 = vmatprep.mubr.f32.mxu0 %v1027
          %1111 = vmatmul.mubr.f32.gmra.mxu0 %v1026
          %v1112 = vpop.f32.mrf.mxu0
          %v1113 = vadd.f32 %v1033, %v1112
          %v1114 = vpop.f32.mrf.mxu0
          %v1115 = vadd.f32 %v1037, %v1114
          %1116 = vdwg.mxu0
          %v1117 = vld [vmem:[#allocation2] sm:$0xff]
          %v1118 = vld [vmem:[#allocation2 + $0x8] sm:$0xff]
          %1119 = vmatprep.subr.mxu0 0.0
          %1120 = vmatpush1.xpose.msra.mxu0 0.0
          %1121 = vmatprep.subr.mxu0 0.0
          %1122 = vmatpush1.xpose.msra.mxu0 0.0
          %1123 = vmatprep.subr.mxu0 0.0
          %1124 = vmatpush1.xpose.msra.mxu0 0.0
          %1125 = vmatprep.subr.mxu0 0.0
          %1126 = vmatpush1.xpose.msra.mxu0 0.0
          %1127 = vmatprep.subr.mxu0 0.0
          %1128 = vmatpush1.xpose.msra.mxu0 0.0
          %1129 = vmatprep.subr.mxu0 0.0
          %1130 = vmatpush1.xpose.msra.mxu0 0.0
          %1131 = vmatprep.subr.mxu0 0.0
          %1132 = vmatpush1.xpose.msra.mxu0 0.0
          %1133 = vmatprep.subr.mxu0 0.0
          %1134 = vmatpush1.xpose.msra.mxu0 0.0
          %1135 = vmatprep.subr.mxu0 0.0
          %1136 = vmatpush1.xpose.msra.mxu0 0.0
          %1137 = vmatprep.subr.mxu0 0.0
          %1138 = vmatpush1.xpose.msra.mxu0 0.0
          %1139 = vmatprep.subr.mxu0 0.0
          %1140 = vmatpush1.xpose.msra.mxu0 0.0
          %1141 = vmatprep.subr.mxu0 0.0
          %1142 = vmatpush1.xpose.msra.mxu0 0.0
          %1143 = vmatprep.subr.mxu0 0.0
          %1144 = vmatpush1.xpose.msra.mxu0 0.0
          %1145 = vmatprep.subr.mxu0 0.0
          %1146 = vmatpush1.xpose.msra.mxu0 0.0
          %1147 = vmatprep.subr.mxu0 0.0
          %1148 = vmatpush1.xpose.msra.mxu0 0.0
          %1149 = vmatprep.subr.mxu0 %v1109
          %1150 = vmatpush1.xpose.msra.mxu0 %v1107
          %1151 = vmatprep.subr.mxu0 0.0
          %1152 = vmatpush2.xpose.msra.mxu0 0.0
          %1153 = vmatprep.subr.mxu0 0.0
          %1154 = vmatpush2.xpose.msra.mxu0 0.0
          %1155 = vmatprep.subr.mxu0 0.0
          %1156 = vmatpush2.xpose.msra.mxu0 0.0
          %1157 = vmatprep.subr.mxu0 0.0
          %1158 = vmatpush2.xpose.msra.mxu0 0.0
          %1159 = vmatprep.subr.mxu0 0.0
          %1160 = vmatpush2.xpose.msra.mxu0 0.0
          %1161 = vmatprep.subr.mxu0 0.0
          %1162 = vmatpush2.xpose.msra.mxu0 0.0
          %1163 = vmatprep.subr.mxu0 0.0
          %1164 = vmatpush2.xpose.msra.mxu0 0.0
          %1165 = vmatprep.subr.mxu0 0.0
          %1166 = vmatpush2.xpose.msra.mxu0 0.0
          %1167 = vmatprep.subr.mxu0 0.0
          %1168 = vmatpush2.xpose.msra.mxu0 0.0
          %1169 = vmatprep.subr.mxu0 0.0
          %1170 = vmatpush2.xpose.msra.mxu0 0.0
          %1171 = vmatprep.subr.mxu0 0.0
          %1172 = vmatpush2.xpose.msra.mxu0 0.0
          %1173 = vmatprep.subr.mxu0 0.0
          %1174 = vmatpush2.xpose.msra.mxu0 0.0
          %1175 = vmatprep.subr.mxu0 0.0
          %1176 = vmatpush2.xpose.msra.mxu0 0.0
          %1177 = vmatprep.subr.mxu0 0.0
          %1178 = vmatpush2.xpose.msra.mxu0 0.0
          %1179 = vmatprep.subr.mxu0 0.0
          %1180 = vmatpush2.xpose.msra.mxu0 0.0
          %1181 = vmatprep.subr.mxu0 0.0
          %1182 = vmatpush2.xpose.msra.mxu0 0.0
          %1183 = vmatprep.mubr.f32.mxu0 %v1004
          %1184 = vmatmul.mubr.f32.gmra.mxu0 %v1002
          %v1185 = vpop.f32.mrf.mxu0
          %v1186 = vadd.f32 0.0, %v1185
          %v1187 = vpop.f32.mrf.mxu0
          %1188 = vmatprep.mubr.f32.mxu0 %v1010
          %1189 = vmatmul.mubr.f32.gmra.mxu0 %v1008
          %v1190 = vpop.f32.mrf.mxu0
          %v1191 = vadd.f32 0.0, %v1190
          %v1192 = vpop.f32.mrf.mxu0
          %1193 = vdwg.mxu0
          %v1194 = vadd.f32 %v1117, %v1186
          %v1195 = vadd.f32 %v1118, %v1191
          %vm1196 = vcmask 64512
          %1197 = vst.msk [vmem:[#allocation2] sm:$0xff] %vm1196, %v1194
          %1198 = vst.msk [vmem:[#allocation2 + $0x8] sm:$0xff] %vm1196, %v1195
          %v1199 = vld [vmem:[#allocation2] sm:$0xff]
          %v1200 = vld [vmem:[#allocation2 + $0x8] sm:$0xff]
          %1201 = vmatprep.subr.mxu0 0.0
          %1202 = vmatpush1.xpose.msra.mxu0 0.0
          %1203 = vmatprep.subr.mxu0 0.0
          %1204 = vmatpush1.xpose.msra.mxu0 0.0
          %1205 = vmatprep.subr.mxu0 0.0
          %1206 = vmatpush1.xpose.msra.mxu0 0.0
          %1207 = vmatprep.subr.mxu0 0.0
          %1208 = vmatpush1.xpose.msra.mxu0 0.0
          %1209 = vmatprep.subr.mxu0 0.0
          %1210 = vmatpush1.xpose.msra.mxu0 0.0
          %1211 = vmatprep.subr.mxu0 0.0
          %1212 = vmatpush1.xpose.msra.mxu0 0.0
          %1213 = vmatprep.subr.mxu0 0.0
          %1214 = vmatpush1.xpose.msra.mxu0 0.0
          %1215 = vmatprep.subr.mxu0 0.0
          %1216 = vmatpush1.xpose.msra.mxu0 0.0
          %1217 = vmatprep.subr.mxu0 0.0
          %1218 = vmatpush1.xpose.msra.mxu0 0.0
          %1219 = vmatprep.subr.mxu0 0.0
          %1220 = vmatpush1.xpose.msra.mxu0 0.0
          %1221 = vmatprep.subr.mxu0 0.0
          %1222 = vmatpush1.xpose.msra.mxu0 0.0
          %1223 = vmatprep.subr.mxu0 0.0
          %1224 = vmatpush1.xpose.msra.mxu0 0.0
          %1225 = vmatprep.subr.mxu0 0.0
          %1226 = vmatpush1.xpose.msra.mxu0 0.0
          %1227 = vmatprep.subr.mxu0 0.0
          %1228 = vmatpush1.xpose.msra.mxu0 0.0
          %1229 = vmatprep.subr.mxu0 0.0
          %1230 = vmatpush1.xpose.msra.mxu0 0.0
          %1231 = vmatprep.subr.mxu0 %v1115
          %1232 = vmatpush1.xpose.msra.mxu0 %v1113
          %1233 = vmatprep.subr.mxu0 0.0
          %1234 = vmatpush2.xpose.msra.mxu0 0.0
          %1235 = vmatprep.subr.mxu0 0.0
          %1236 = vmatpush2.xpose.msra.mxu0 0.0
          %1237 = vmatprep.subr.mxu0 0.0
          %1238 = vmatpush2.xpose.msra.mxu0 0.0
          %1239 = vmatprep.subr.mxu0 0.0
          %1240 = vmatpush2.xpose.msra.mxu0 0.0
          %1241 = vmatprep.subr.mxu0 0.0
          %1242 = vmatpush2.xpose.msra.mxu0 0.0
          %1243 = vmatprep.subr.mxu0 0.0
          %1244 = vmatpush2.xpose.msra.mxu0 0.0
          %1245 = vmatprep.subr.mxu0 0.0
          %1246 = vmatpush2.xpose.msra.mxu0 0.0
          %1247 = vmatprep.subr.mxu0 0.0
          %1248 = vmatpush2.xpose.msra.mxu0 0.0
          %1249 = vmatprep.subr.mxu0 0.0
          %1250 = vmatpush2.xpose.msra.mxu0 0.0
          %1251 = vmatprep.subr.mxu0 0.0
          %1252 = vmatpush2.xpose.msra.mxu0 0.0
          %1253 = vmatprep.subr.mxu0 0.0
          %1254 = vmatpush2.xpose.msra.mxu0 0.0
          %1255 = vmatprep.subr.mxu0 0.0
          %1256 = vmatpush2.xpose.msra.mxu0 0.0
          %1257 = vmatprep.subr.mxu0 0.0
          %1258 = vmatpush2.xpose.msra.mxu0 0.0
          %1259 = vmatprep.subr.mxu0 0.0
          %1260 = vmatpush2.xpose.msra.mxu0 0.0
          %1261 = vmatprep.subr.mxu0 0.0
          %1262 = vmatpush2.xpose.msra.mxu0 0.0
          %1263 = vmatprep.subr.mxu0 0.0
          %1264 = vmatpush2.xpose.msra.mxu0 0.0
          %1265 = vmatprep.mubr.f32.mxu0 %v1016
          %1266 = vmatmul.mubr.f32.gmra.mxu0 %v1014
          %v1267 = vpop.f32.mrf.mxu0
          %v1268 = vadd.f32 0.0, %v1267
          %v1269 = vpop.f32.mrf.mxu0
          %1270 = vmatprep.mubr.f32.mxu0 %v1022
          %1271 = vmatmul.mubr.f32.gmra.mxu0 %v1020
          %v1272 = vpop.f32.mrf.mxu0
          %v1273 = vadd.f32 0.0, %v1272
          %v1274 = vpop.f32.mrf.mxu0
          %1275 = vdwg.mxu0
          %1278 = vrot.lane.b32.xlu0 %v1268, 8
          %v1279 = vpop.permute.xlu0 %1278
          %1280 = vrot.lane.b32.xlu0 %v1273, 8
          %v1281 = vpop.permute.xlu0 %1280
          %v1284 = vadd.f32 %v1199, %v1279
          %v1285 = vadd.f32 %v1200, %v1281
          %vm1286 = vcmask 130112
          %1287 = vst.msk [vmem:[#allocation2] sm:$0xff] %vm1286, %v1284
          %1288 = vst.msk [vmem:[#allocation2 + $0x8] sm:$0xff] %vm1286, %v1285
        $region106: #{cross_transformer.1} parent=89 // pred_fallthru
          _
        %p1289 = scmp.eq.s32.totalorder %s31, 3
        %p1290 = pnand %p711, %p1289
        %p1291 = pneg %p1290
        // Predicated region
        $region107: #{cross_transformer.1} parent=89 // pred_check
          _
        $region108: #{cross_transformer.1} parent=89 // pred_check_branch
          %1293 = sbr.rel (%p1290) target = $region110
        $region109: #{cross_transformer.1} parent=89 // pred_region
          %v1294 = vld [vmem:[#allocation2] sm:$0xff]
          %v1295 = vld [vmem:[#allocation2 + $0x8] sm:$0xff]
          %v1296 = vmul.f32 %v1294, 0.03125
          %v1297 = vmul.f32 %v1295, 0.03125
          %vm1298 = vcmask 130048
          %v1299 = vsel %vm1298, %v1296, -inf
          %v1300 = vsel %vm1298, %v1297, -inf
          %v1301 = vmax.f32 %v1299, %v1300
          %v1302 = vrot.slane %v1301, 4
          %v1303 = vmax.f32 %v1301, %v1302
          %v1304 = vrot.slane %v1303, 2
          %v1305 = vmax.f32 %v1303, %v1304
          %v1306 = vrot.slane %v1305, 1
          %v1307 = vmax.f32 %v1305, %v1306
          %v1308 = vsub.f32 %v1296, %v1307
          %v1309 = vsub.f32 %v1297, %v1307
          %v1310 = vmul.f32 %v1308, 1.442695
          %v1311 = vpow.pop %v1310
          %v1312 = vmul.f32 %v1309, 1.442695
          %v1313 = vpow.pop %v1312
          %v1314 = vsel %vm1298, %v1311, 0.0
          %v1315 = vsel %vm1298, %v1313, 0.0
          %v1316 = vadd.f32 %v1314, %v1315
          %v1317 = vrot.slane %v1316, 4
          %v1318 = vadd.f32 %v1316, %v1317
          %v1319 = vrot.slane %v1318, 2
          %v1320 = vadd.f32 %v1318, %v1319
          %v1321 = vrot.slane %v1320, 1
          %v1322 = vadd.f32 %v1320, %v1321
          %v1323 = vrcp.pop %v1322
          %v1324 = vmul.f32 %v1311, %v1323
          %v1325 = vmul.f32 %v1313, %v1323
          %1326 = vst.msk [vmem:[#allocation2] sm:$0xff] %vm1298, %v1324
          %1327 = vst.msk [vmem:[#allocation2 + $0x8] sm:$0xff] %vm1298, %v1325
          %vm1328 = vcmask 64512
          %1329 = vst.msk [vmem:[%s10] sm:$0xff] %vm1328, %v1324
          %1330 = vst.msk [vmem:[%s10 + $0x8] sm:$0xff] %vm1328, %v1325
          %v1332 = vsel %vm1328, %v1324, 0
          %v1335 = vsel %vm1328, %v1325, 0
          %1337 = vmatprep.subr.mxu0 0.0
          %1338 = vmatpush1.xpose.msra.mxu0 0.0
          %1339 = vmatprep.subr.mxu0 0.0
          %1340 = vmatpush1.xpose.msra.mxu0 0.0
          %1341 = vmatprep.subr.mxu0 0.0
          %1342 = vmatpush1.xpose.msra.mxu0 0.0
          %1343 = vmatprep.subr.mxu0 0.0
          %1344 = vmatpush1.xpose.msra.mxu0 0.0
          %1345 = vmatprep.subr.mxu0 0.0
          %1346 = vmatpush1.xpose.msra.mxu0 0.0
          %1347 = vmatprep.subr.mxu0 0.0
          %1348 = vmatpush1.xpose.msra.mxu0 0.0
          %1349 = vmatprep.subr.mxu0 0.0
          %1350 = vmatpush1.xpose.msra.mxu0 0.0
          %1351 = vmatprep.subr.mxu0 0.0
          %1352 = vmatpush1.xpose.msra.mxu0 0.0
          %1353 = vmatprep.subr.mxu0 0.0
          %1354 = vmatpush1.xpose.msra.mxu0 0.0
          %1355 = vmatprep.subr.mxu0 0.0
          %1356 = vmatpush1.xpose.msra.mxu0 0.0
          %1357 = vmatprep.subr.mxu0 0.0
          %1358 = vmatpush1.xpose.msra.mxu0 0.0
          %1359 = vmatprep.subr.mxu0 0.0
          %1360 = vmatpush1.xpose.msra.mxu0 0.0
          %1361 = vmatprep.subr.mxu0 0.0
          %1362 = vmatpush1.xpose.msra.mxu0 0.0
          %1363 = vmatprep.subr.mxu0 0.0
          %1364 = vmatpush1.xpose.msra.mxu0 0.0
          %1365 = vmatprep.subr.mxu0 0.0
          %1366 = vmatpush1.xpose.msra.mxu0 %v1335
          %1367 = vmatprep.subr.mxu0 0.0
          %1368 = vmatpush1.xpose.msra.mxu0 %v1332
          %1369 = vmatprep.subr.mxu0 0.0
          %1370 = vmatpush2.xpose.msra.mxu0 0.0
          %1371 = vmatprep.subr.mxu0 0.0
          %1372 = vmatpush2.xpose.msra.mxu0 0.0
          %1373 = vmatprep.subr.mxu0 0.0
          %1374 = vmatpush2.xpose.msra.mxu0 0.0
          %1375 = vmatprep.subr.mxu0 0.0
          %1376 = vmatpush2.xpose.msra.mxu0 0.0
          %1377 = vmatprep.subr.mxu0 0.0
          %1378 = vmatpush2.xpose.msra.mxu0 0.0
          %1379 = vmatprep.subr.mxu0 0.0
          %1380 = vmatpush2.xpose.msra.mxu0 0.0
          %1381 = vmatprep.subr.mxu0 0.0
          %1382 = vmatpush2.xpose.msra.mxu0 0.0
          %1383 = vmatprep.subr.mxu0 0.0
          %1384 = vmatpush2.xpose.msra.mxu0 0.0
          %1385 = vmatprep.subr.mxu0 0.0
          %1386 = vmatpush2.xpose.msra.mxu0 0.0
          %1387 = vmatprep.subr.mxu0 0.0
          %1388 = vmatpush2.xpose.msra.mxu0 0.0
          %1389 = vmatprep.subr.mxu0 0.0
          %1390 = vmatpush2.xpose.msra.mxu0 0.0
          %1391 = vmatprep.subr.mxu0 0.0
          %1392 = vmatpush2.xpose.msra.mxu0 0.0
          %1393 = vmatprep.subr.mxu0 0.0
          %1394 = vmatpush2.xpose.msra.mxu0 0.0
          %1395 = vmatprep.subr.mxu0 0.0
          %1396 = vmatpush2.xpose.msra.mxu0 0.0
          %1397 = vmatprep.subr.mxu0 0.0
          %1398 = vmatpush2.xpose.msra.mxu0 0.0
          %1399 = vmatprep.subr.mxu0 0.0
          %1400 = vmatpush2.xpose.msra.mxu0 0.0
          %1401 = vmatprep.mubr.f32.mxu0 0.0
          %1402 = vmatmul.mubr.f32.gmra.mxu0 %v1332
          %v1403 = vpop.f32.mrf.mxu0
          %v1404 = vadd.f32 0.0, %v1403
          %v1405 = vpop.f32.mrf.mxu0
          %1406 = vmatprep.mubr.f32.mxu0 0.0
          %1407 = vmatmul.mubr.f32.gmra.mxu0 %v1335
          %v1408 = vpop.f32.mrf.mxu0
          %v1409 = vadd.f32 0.0, %v1408
          %v1410 = vpop.f32.mrf.mxu0
          %1411 = vdwg.mxu0
          %v1412 = vmul.f32 %v1404, %v1404
          %v1413 = vmul.f32 %v1409, %v1409
          %v1414 = vsel %vm1298, %v1412, 0.0
          %v1415 = vsel %vm1298, %v1413, 0.0
          %v1416 = vadd.f32 %v1414, %v1415
          %1417 = vadd.xlane.f32.xlu0 %v1416
          %v1418 = vpop.xlane.xlu0 %1417
          %v1419 = vrot.slane %v1418, 4
          %v1420 = vadd.f32 %v1418, %v1419
          %v1421 = vrot.slane %v1420, 2
          %v1422 = vadd.f32 %v1420, %v1421
          %v1423 = vrot.slane %v1422, 1
          %v1424 = vadd.f32 %v1422, %v1423
          %s1425 = vtos %v1424
          %v1426 = vmul.f32 %v1324, %v1324
          %v1427 = vmul.f32 %v1325, %v1325
          %v1428 = vsel %vm1328, %v1426, 0.0
          %v1429 = vsel %vm1328, %v1427, 0.0
          %v1430 = vadd.f32 %v1428, %v1429
          %1431 = vadd.xlane.f32.xlu0 %v1430
          %v1432 = vpop.xlane.xlu0 %1431
          %v1433 = vrot.slane %v1432, 4
          %v1434 = vadd.f32 %v1432, %v1433
          %v1435 = vrot.slane %v1434, 2
          %v1436 = vadd.f32 %v1434, %v1435
          %v1437 = vrot.slane %v1436, 1
          %v1438 = vadd.f32 %v1436, %v1437
          %s1439 = vtos %v1438
          %s1440 = smul.f32 %s1439, 2.0
          %s1441 = ssub.f32 %s1425, %s1440
          %s1442 = sadd.f32 %s1441, 16.0
          %s1443 = sadd.f32 %s1442, 0.0
          %1444 = vrot.lane.b32.xlu0 %v1324, 120
          %v1445 = vpop.permute.xlu0 %1444
          %1446 = vrot.lane.b32.xlu0 %v1325, 120
          %v1447 = vpop.permute.xlu0 %1446
          %s1450 = scalar_lea.vmem %s10, 16
          %1451 = vst.msk [vmem:[%s1450] sm:$0xff] %vm1328, %v1445
          %1452 = vst.msk [vmem:[%s1450 + $0x8] sm:$0xff] %vm1328, %v1447
          %v1453 = vsel %vm1328, %v1445, 0
          %v1455 = vsel %vm1328, %v1447, 0
          %1457 = vmatprep.subr.mxu0 0.0
          %1458 = vmatpush1.xpose.msra.mxu0 0.0
          %1459 = vmatprep.subr.mxu0 0.0
          %1460 = vmatpush1.xpose.msra.mxu0 0.0
          %1461 = vmatprep.subr.mxu0 0.0
          %1462 = vmatpush1.xpose.msra.mxu0 0.0
          %1463 = vmatprep.subr.mxu0 0.0
          %1464 = vmatpush1.xpose.msra.mxu0 0.0
          %1465 = vmatprep.subr.mxu0 0.0
          %1466 = vmatpush1.xpose.msra.mxu0 0.0
          %1467 = vmatprep.subr.mxu0 0.0
          %1468 = vmatpush1.xpose.msra.mxu0 0.0
          %1469 = vmatprep.subr.mxu0 0.0
          %1470 = vmatpush1.xpose.msra.mxu0 0.0
          %1471 = vmatprep.subr.mxu0 0.0
          %1472 = vmatpush1.xpose.msra.mxu0 0.0
          %1473 = vmatprep.subr.mxu0 0.0
          %1474 = vmatpush1.xpose.msra.mxu0 0.0
          %1475 = vmatprep.subr.mxu0 0.0
          %1476 = vmatpush1.xpose.msra.mxu0 0.0
          %1477 = vmatprep.subr.mxu0 0.0
          %1478 = vmatpush1.xpose.msra.mxu0 0.0
          %1479 = vmatprep.subr.mxu0 0.0
          %1480 = vmatpush1.xpose.msra.mxu0 0.0
          %1481 = vmatprep.subr.mxu0 0.0
          %1482 = vmatpush1.xpose.msra.mxu0 0.0
          %1483 = vmatprep.subr.mxu0 0.0
          %1484 = vmatpush1.xpose.msra.mxu0 0.0
          %1485 = vmatprep.subr.mxu0 0.0
          %1486 = vmatpush1.xpose.msra.mxu0 %v1455
          %1487 = vmatprep.subr.mxu0 0.0
          %1488 = vmatpush1.xpose.msra.mxu0 %v1453
          %1489 = vmatprep.subr.mxu0 0.0
          %1490 = vmatpush2.xpose.msra.mxu0 0.0
          %1491 = vmatprep.subr.mxu0 0.0
          %1492 = vmatpush2.xpose.msra.mxu0 0.0
          %1493 = vmatprep.subr.mxu0 0.0
          %1494 = vmatpush2.xpose.msra.mxu0 0.0
          %1495 = vmatprep.subr.mxu0 0.0
          %1496 = vmatpush2.xpose.msra.mxu0 0.0
          %1497 = vmatprep.subr.mxu0 0.0
          %1498 = vmatpush2.xpose.msra.mxu0 0.0
          %1499 = vmatprep.subr.mxu0 0.0
          %1500 = vmatpush2.xpose.msra.mxu0 0.0
          %1501 = vmatprep.subr.mxu0 0.0
          %1502 = vmatpush2.xpose.msra.mxu0 0.0
          %1503 = vmatprep.subr.mxu0 0.0
          %1504 = vmatpush2.xpose.msra.mxu0 0.0
          %1505 = vmatprep.subr.mxu0 0.0
          %1506 = vmatpush2.xpose.msra.mxu0 0.0
          %1507 = vmatprep.subr.mxu0 0.0
          %1508 = vmatpush2.xpose.msra.mxu0 0.0
          %1509 = vmatprep.subr.mxu0 0.0
          %1510 = vmatpush2.xpose.msra.mxu0 0.0
          %1511 = vmatprep.subr.mxu0 0.0
          %1512 = vmatpush2.xpose.msra.mxu0 0.0
          %1513 = vmatprep.subr.mxu0 0.0
          %1514 = vmatpush2.xpose.msra.mxu0 0.0
          %1515 = vmatprep.subr.mxu0 0.0
          %1516 = vmatpush2.xpose.msra.mxu0 0.0
          %1517 = vmatprep.subr.mxu0 0.0
          %1518 = vmatpush2.xpose.msra.mxu0 0.0
          %1519 = vmatprep.subr.mxu0 0.0
          %1520 = vmatpush2.xpose.msra.mxu0 0.0
          %1521 = vmatprep.mubr.f32.mxu0 0.0
          %1522 = vmatmul.mubr.f32.gmra.mxu0 %v1453
          %v1523 = vpop.f32.mrf.mxu0
          %v1524 = vadd.f32 0.0, %v1523
          %v1525 = vpop.f32.mrf.mxu0
          %1526 = vmatprep.mubr.f32.mxu0 0.0
          %1527 = vmatmul.mubr.f32.gmra.mxu0 %v1455
          %v1528 = vpop.f32.mrf.mxu0
          %v1529 = vadd.f32 0.0, %v1528
          %v1530 = vpop.f32.mrf.mxu0
          %1531 = vdwg.mxu0
          %v1532 = vmul.f32 %v1524, %v1524
          %v1533 = vmul.f32 %v1529, %v1529
          %v1534 = vsel %vm1298, %v1532, 0.0
          %v1535 = vsel %vm1298, %v1533, 0.0
          %v1536 = vadd.f32 %v1534, %v1535
          %1537 = vadd.xlane.f32.xlu0 %v1536
          %v1538 = vpop.xlane.xlu0 %1537
          %v1539 = vrot.slane %v1538, 4
          %v1540 = vadd.f32 %v1538, %v1539
          %v1541 = vrot.slane %v1540, 2
          %v1542 = vadd.f32 %v1540, %v1541
          %v1543 = vrot.slane %v1542, 1
          %v1544 = vadd.f32 %v1542, %v1543
          %s1545 = vtos %v1544
          %1548 = vrot.lane.b32.xlu0 %v1426, 120
          %v1549 = vpop.permute.xlu0 %1548
          %1550 = vrot.lane.b32.xlu0 %v1427, 120
          %v1551 = vpop.permute.xlu0 %1550
          %v1554 = vsel %vm1328, %v1549, 0.0
          %v1555 = vsel %vm1328, %v1551, 0.0
          %v1556 = vadd.f32 %v1554, %v1555
          %1557 = vadd.xlane.f32.xlu0 %v1556
          %v1558 = vpop.xlane.xlu0 %1557
          %v1559 = vrot.slane %v1558, 4
          %v1560 = vadd.f32 %v1558, %v1559
          %v1561 = vrot.slane %v1560, 2
          %v1562 = vadd.f32 %v1560, %v1561
          %v1563 = vrot.slane %v1562, 1
          %v1564 = vadd.f32 %v1562, %v1563
          %s1565 = vtos %v1564
          %s1566 = smul.f32 %s1565, 2.0
          %s1567 = ssub.f32 %s1545, %s1566
          %s1568 = sadd.f32 %s1567, 16.0
          %s1569 = sadd.f32 %s1443, %s1568
          %s1570 = smul.f32 %s1569, 0.001953125
          %v1571 = vstv %s1570
          %vm1572 = vcmask 0
          %1573 = vst.msk [vmem:[#allocation7] sm:$0x1] %vm1572, %v1571
        $region110: #{cross_transformer.1} parent=89 // pred_fallthru
          _
        %p1574 = scmp.eq.s32.totalorder %s30, 1
        // Predicated region
        $region111: #{cross_transformer.1} parent=89 // pred_check
          %p1575 = pneg %p1574
        $region112: #{cross_transformer.1} parent=89 // pred_check_branch
          %1577 = sbr.rel (%p1575) target = $region114
        $region113: #{cross_transformer.1} parent=89 // pred_region
          %v1578 = vld [vmem:[%s648] sm:$0xff]
          %v1579 = vld [vmem:[%s648 + $0x8] sm:$0xff]
          %v1580 = vld [vmem:[%s648 + $0x10] sm:$0xff]
          %v1581 = vld [vmem:[%s648 + $0x18] sm:$0xff]
          %v1582 = vld [vmem:[%s648 + $0x20] sm:$0xff]
          %v1583 = vld [vmem:[%s648 + $0x28] sm:$0xff]
          %v1584 = vld [vmem:[%s648 + $0x30] sm:$0xff]
          %v1585 = vld [vmem:[%s648 + $0x38] sm:$0xff]
          %v1586 = vld [vmem:[%s648 + $0x40] sm:$0xff]
          %v1587 = vld [vmem:[%s648 + $0x48] sm:$0xff]
          %v1588 = vld [vmem:[%s648 + $0x50] sm:$0xff]
          %v1589 = vld [vmem:[%s648 + $0x58] sm:$0xff]
          %v1590 = vld [vmem:[%s648 + $0x60] sm:$0xff]
          %v1591 = vld [vmem:[%s648 + $0x68] sm:$0xff]
          %v1592 = vld [vmem:[%s648 + $0x70] sm:$0xff]
          %v1593 = vld [vmem:[%s648 + $0x78] sm:$0xff]
          %v1594 = vld [vmem:[%s648 + $0x80] sm:$0xff]
          %v1595 = vld [vmem:[%s648 + $0x88] sm:$0xff]
          %v1596 = vld [vmem:[%s648 + $0x90] sm:$0xff]
          %v1597 = vld [vmem:[%s648 + $0x98] sm:$0xff]
          %v1598 = vld [vmem:[%s648 + $0xa0] sm:$0xff]
          %v1599 = vld [vmem:[%s648 + $0xa8] sm:$0xff]
          %v1600 = vld [vmem:[%s648 + $0xb0] sm:$0xff]
          %v1601 = vld [vmem:[%s648 + $0xb8] sm:$0xff]
          %v1602 = vld [vmem:[%s648 + $0xc0] sm:$0xff]
          %v1603 = vld [vmem:[%s648 + $0xc8] sm:$0xff]
          %v1604 = vld [vmem:[%s648 + $0xd0] sm:$0xff]
          %v1605 = vld [vmem:[%s648 + $0xd8] sm:$0xff]
          %v1606 = vld [vmem:[%s648 + $0xe0] sm:$0xff]
          %v1607 = vld [vmem:[%s648 + $0xe8] sm:$0xff]
          %v1608 = vld [vmem:[%s648 + $0xf0] sm:$0xff]
          %v1609 = vld [vmem:[%s648 + $0xf8] sm:$0xff]
          %v1610 = vunpack.c.l.bf16 %v1578
          %v1611 = vunpack.c.h.bf16 %v1578
          %v1612 = vunpack.c.l.bf16 %v1579
          %v1613 = vunpack.c.h.bf16 %v1579
          %v1614 = vunpack.c.l.bf16 %v1580
          %v1615 = vunpack.c.h.bf16 %v1580
          %v1616 = vunpack.c.l.bf16 %v1581
          %v1617 = vunpack.c.h.bf16 %v1581
          %v1618 = vunpack.c.l.bf16 %v1582
          %v1619 = vunpack.c.h.bf16 %v1582
          %v1620 = vunpack.c.l.bf16 %v1583
          %v1621 = vunpack.c.h.bf16 %v1583
          %v1622 = vunpack.c.l.bf16 %v1584
          %v1623 = vunpack.c.h.bf16 %v1584
          %v1624 = vunpack.c.l.bf16 %v1585
          %v1625 = vunpack.c.h.bf16 %v1585
          %v1626 = vunpack.c.l.bf16 %v1586
          %v1627 = vunpack.c.h.bf16 %v1586
          %v1628 = vunpack.c.l.bf16 %v1587
          %v1629 = vunpack.c.h.bf16 %v1587
          %v1630 = vunpack.c.l.bf16 %v1588
          %v1631 = vunpack.c.h.bf16 %v1588
          %v1632 = vunpack.c.l.bf16 %v1589
          %v1633 = vunpack.c.h.bf16 %v1589
          %v1634 = vunpack.c.l.bf16 %v1590
          %v1635 = vunpack.c.h.bf16 %v1590
          %v1636 = vunpack.c.l.bf16 %v1591
          %v1637 = vunpack.c.h.bf16 %v1591
          %v1638 = vunpack.c.l.bf16 %v1592
          %v1639 = vunpack.c.h.bf16 %v1592
          %v1640 = vunpack.c.l.bf16 %v1593
          %v1641 = vunpack.c.h.bf16 %v1593
          %v1642 = vunpack.c.l.bf16 %v1594
          %v1643 = vunpack.c.h.bf16 %v1594
          %v1644 = vunpack.c.l.bf16 %v1595
          %v1645 = vunpack.c.h.bf16 %v1595
          %v1646 = vunpack.c.l.bf16 %v1596
          %v1647 = vunpack.c.h.bf16 %v1596
          %v1648 = vunpack.c.l.bf16 %v1597
          %v1649 = vunpack.c.h.bf16 %v1597
          %v1650 = vunpack.c.l.bf16 %v1598
          %v1651 = vunpack.c.h.bf16 %v1598
          %v1652 = vunpack.c.l.bf16 %v1599
          %v1653 = vunpack.c.h.bf16 %v1599
          %v1654 = vunpack.c.l.bf16 %v1600
          %v1655 = vunpack.c.h.bf16 %v1600
          %v1656 = vunpack.c.l.bf16 %v1601
          %v1657 = vunpack.c.h.bf16 %v1601
          %v1658 = vunpack.c.l.bf16 %v1602
          %v1659 = vunpack.c.h.bf16 %v1602
          %v1660 = vunpack.c.l.bf16 %v1603
          %v1661 = vunpack.c.h.bf16 %v1603
          %v1662 = vunpack.c.l.bf16 %v1604
          %v1663 = vunpack.c.h.bf16 %v1604
          %v1664 = vunpack.c.l.bf16 %v1605
          %v1665 = vunpack.c.h.bf16 %v1605
          %v1666 = vunpack.c.l.bf16 %v1606
          %v1667 = vunpack.c.h.bf16 %v1606
          %v1668 = vunpack.c.l.bf16 %v1607
          %v1669 = vunpack.c.h.bf16 %v1607
          %v1670 = vunpack.c.l.bf16 %v1608
          %v1671 = vunpack.c.h.bf16 %v1608
          %v1672 = vunpack.c.l.bf16 %v1609
          %v1673 = vunpack.c.h.bf16 %v1609
          %v1674 = vld [vmem:[#allocation2] sm:$0xff]
          %v1675 = vld [vmem:[#allocation2 + $0x8] sm:$0xff]
          %v1676 = vld [vmem:[%s553] sm:$0xff]
          %v1677 = vld [vmem:[%s553 + $0x8] sm:$0xff]
          %v1678 = vld [vmem:[%s553 + $0x10] sm:$0xff]
          %v1679 = vld [vmem:[%s553 + $0x18] sm:$0xff]
          %1680 = vxpose.xlu0.b32.start [1/16] %v1674, 128
          %1681 = vxpose.xlu0.b32.cont [2/16] %v1675, 128
          %1682 = vxpose.xlu0.b32.cont [3/16] 0.0, 128
          %1683 = vxpose.xlu0.b32.cont [4/16] 0.0, 128
          %1684 = vxpose.xlu0.b32.cont [5/16] 0.0, 128
          %1685 = vxpose.xlu0.b32.cont [6/16] 0.0, 128
          %1686 = vxpose.xlu0.b32.cont [7/16] 0.0, 128
          %1687 = vxpose.xlu0.b32.cont [8/16] 0.0, 128
          %1688 = vxpose.xlu0.b32.cont [9/16] 0.0, 128
          %1689 = vxpose.xlu0.b32.cont [10/16] 0.0, 128
          %1690 = vxpose.xlu0.b32.cont [11/16] 0.0, 128
          %1691 = vxpose.xlu0.b32.cont [12/16] 0.0, 128
          %1692 = vxpose.xlu0.b32.cont [13/16] 0.0, 128
          %1693 = vxpose.xlu0.b32.cont [14/16] 0.0, 128
          %1694 = vxpose.xlu0.b32.cont [15/16] 0.0, 128
          %1695 = vxpose.xlu0.b32.end [16/16] 0.0, 128
          %v1696 = vpop.trf.xlu0
          %v1697 = vpop.trf.xlu0
          %v1698 = vpop.trf.xlu0
          %v1699 = vpop.trf.xlu0
          %v1700 = vpop.trf.xlu0
          %v1701 = vpop.trf.xlu0
          %v1702 = vpop.trf.xlu0
          %v1703 = vpop.trf.xlu0
          %v1704 = vpop.trf.xlu0
          %v1705 = vpop.trf.xlu0
          %v1706 = vpop.trf.xlu0
          %v1707 = vpop.trf.xlu0
          %v1708 = vpop.trf.xlu0
          %v1709 = vpop.trf.xlu0
          %v1710 = vpop.trf.xlu0
          %v1711 = vpop.trf.xlu0
          %vm1712 = vcmask 130048
          %v1714 = vsel %vm1712, %v1696, 0
          %1716 = vmatprep.subr.mxu0 0.0
          %1717 = vmatpush1.msra.mxu0 0.0
          %1718 = vmatprep.subr.mxu0 0.0
          %1719 = vmatpush1.msra.mxu0 0.0
          %1720 = vmatprep.subr.mxu0 0.0
          %1721 = vmatpush1.msra.mxu0 0.0
          %1722 = vmatprep.subr.mxu0 0.0
          %1723 = vmatpush1.msra.mxu0 0.0
          %1724 = vmatprep.subr.mxu0 0.0
          %1725 = vmatpush1.msra.mxu0 0.0
          %1726 = vmatprep.subr.mxu0 0.0
          %1727 = vmatpush1.msra.mxu0 0.0
          %1728 = vmatprep.subr.mxu0 0.0
          %1729 = vmatpush1.msra.mxu0 0.0
          %1730 = vmatprep.subr.mxu0 0.0
          %1731 = vmatpush1.msra.mxu0 0.0
          %1732 = vmatprep.subr.mxu0 0.0
          %1733 = vmatpush1.msra.mxu0 0.0
          %1734 = vmatprep.subr.mxu0 0.0
          %1735 = vmatpush1.msra.mxu0 0.0
          %1736 = vmatprep.subr.mxu0 0.0
          %1737 = vmatpush1.msra.mxu0 0.0
          %1738 = vmatprep.subr.mxu0 0.0
          %1739 = vmatpush1.msra.mxu0 0.0
          %1740 = vmatprep.subr.mxu0 0.0
          %1741 = vmatpush1.msra.mxu0 0.0
          %1742 = vmatprep.subr.mxu0 0.0
          %1743 = vmatpush1.msra.mxu0 0.0
          %1744 = vmatprep.subr.mxu0 %v1679
          %1745 = vmatpush1.msra.mxu0 %v1678
          %1746 = vmatprep.subr.mxu0 %v1677
          %1747 = vmatpush1.msra.mxu0 %v1676
          %1748 = vmatprep.subr.mxu0 0.0
          %1749 = vmatpush2.msra.mxu0 0.0
          %1750 = vmatprep.subr.mxu0 0.0
          %1751 = vmatpush2.msra.mxu0 0.0
          %1752 = vmatprep.subr.mxu0 0.0
          %1753 = vmatpush2.msra.mxu0 0.0
          %1754 = vmatprep.subr.mxu0 0.0
          %1755 = vmatpush2.msra.mxu0 0.0
          %1756 = vmatprep.subr.mxu0 0.0
          %1757 = vmatpush2.msra.mxu0 0.0
          %1758 = vmatprep.subr.mxu0 0.0
          %1759 = vmatpush2.msra.mxu0 0.0
          %1760 = vmatprep.subr.mxu0 0.0
          %1761 = vmatpush2.msra.mxu0 0.0
          %1762 = vmatprep.subr.mxu0 0.0
          %1763 = vmatpush2.msra.mxu0 0.0
          %1764 = vmatprep.subr.mxu0 0.0
          %1765 = vmatpush2.msra.mxu0 0.0
          %1766 = vmatprep.subr.mxu0 0.0
          %1767 = vmatpush2.msra.mxu0 0.0
          %1768 = vmatprep.subr.mxu0 0.0
          %1769 = vmatpush2.msra.mxu0 0.0
          %1770 = vmatprep.subr.mxu0 0.0
          %1771 = vmatpush2.msra.mxu0 0.0
          %1772 = vmatprep.subr.mxu0 0.0
          %1773 = vmatpush2.msra.mxu0 0.0
          %1774 = vmatprep.subr.mxu0 0.0
          %1775 = vmatpush2.msra.mxu0 0.0
          %1776 = vmatprep.subr.mxu0 0.0
          %1777 = vmatpush2.msra.mxu0 0.0
          %1778 = vmatprep.subr.mxu0 0.0
          %1779 = vmatpush2.msra.mxu0 0.0
          %1780 = vmatprep.mubr.f32.mxu0 0.0
          %1781 = vmatmul.mubr.f32.gmra.mxu0 %v1714
          %v1782 = vpop.f32.mrf.mxu0
          %v1783 = vadd.f32 0.0, %v1782
          %v1784 = vpop.f32.mrf.mxu0
          %v1785 = vadd.f32 0.0, %v1784
          %1786 = vdwg.mxu0
          %v1787 = vld [vmem:[%s654] sm:$0x3]
          %v1789 = vlaneseq
          %v1790 = vshrl.u32 %v1789, 7
          %v1791 = vsub.s32 0, %v1790
          %v1792 = vrot.slane %v1787, %v1791
          %v1793 = vlaneseq
          %v1794 = vshrl.u32 %v1793, 7
          %v1795 = vsub.s32 1, %v1794
          %v1796 = vrot.slane %v1787, %v1795
          %1799 = vmatprep.subr.mxu0 %v1641
          %1800 = vmatpush1.msra.mxu0 %v1640
          %1801 = vmatprep.subr.mxu0 %v1639
          %1802 = vmatpush1.msra.mxu0 %v1638
          %1803 = vmatprep.subr.mxu0 %v1637
          %1804 = vmatpush1.msra.mxu0 %v1636
          %1805 = vmatprep.subr.mxu0 %v1635
          %1806 = vmatpush1.msra.mxu0 %v1634
          %1807 = vmatprep.subr.mxu0 %v1633
          %1808 = vmatpush1.msra.mxu0 %v1632
          %1809 = vmatprep.subr.mxu0 %v1631
          %1810 = vmatpush1.msra.mxu0 %v1630
          %1811 = vmatprep.subr.mxu0 %v1629
          %1812 = vmatpush1.msra.mxu0 %v1628
          %1813 = vmatprep.subr.mxu0 %v1627
          %1814 = vmatpush1.msra.mxu0 %v1626
          %1815 = vmatprep.subr.mxu0 %v1625
          %1816 = vmatpush1.msra.mxu0 %v1624
          %1817 = vmatprep.subr.mxu0 %v1623
          %1818 = vmatpush1.msra.mxu0 %v1622
          %1819 = vmatprep.subr.mxu0 %v1621
          %1820 = vmatpush1.msra.mxu0 %v1620
          %1821 = vmatprep.subr.mxu0 %v1619
          %1822 = vmatpush1.msra.mxu0 %v1618
          %1823 = vmatprep.subr.mxu0 %v1617
          %1824 = vmatpush1.msra.mxu0 %v1616
          %1825 = vmatprep.subr.mxu0 %v1615
          %1826 = vmatpush1.msra.mxu0 %v1614
          %1827 = vmatprep.subr.mxu0 %v1613
          %1828 = vmatpush1.msra.mxu0 %v1612
          %1829 = vmatprep.subr.mxu0 %v1611
          %1830 = vmatpush1.msra.mxu0 %v1610
          %1831 = vmatprep.subr.mxu0 %v1673
          %1832 = vmatpush2.msra.mxu0 %v1672
          %1833 = vmatprep.subr.mxu0 %v1671
          %1834 = vmatpush2.msra.mxu0 %v1670
          %1835 = vmatprep.subr.mxu0 %v1669
          %1836 = vmatpush2.msra.mxu0 %v1668
          %1837 = vmatprep.subr.mxu0 %v1667
          %1838 = vmatpush2.msra.mxu0 %v1666
          %1839 = vmatprep.subr.mxu0 %v1665
          %1840 = vmatpush2.msra.mxu0 %v1664
          %1841 = vmatprep.subr.mxu0 %v1663
          %1842 = vmatpush2.msra.mxu0 %v1662
          %1843 = vmatprep.subr.mxu0 %v1661
          %1844 = vmatpush2.msra.mxu0 %v1660
          %1845 = vmatprep.subr.mxu0 %v1659
          %1846 = vmatpush2.msra.mxu0 %v1658
          %1847 = vmatprep.subr.mxu0 %v1657
          %1848 = vmatpush2.msra.mxu0 %v1656
          %1849 = vmatprep.subr.mxu0 %v1655
          %1850 = vmatpush2.msra.mxu0 %v1654
          %1851 = vmatprep.subr.mxu0 %v1653
          %1852 = vmatpush2.msra.mxu0 %v1652
          %1853 = vmatprep.subr.mxu0 %v1651
          %1854 = vmatpush2.msra.mxu0 %v1650
          %1855 = vmatprep.subr.mxu0 %v1649
          %1856 = vmatpush2.msra.mxu0 %v1648
          %1857 = vmatprep.subr.mxu0 %v1647
          %1858 = vmatpush2.msra.mxu0 %v1646
          %1859 = vmatprep.subr.mxu0 %v1645
          %1860 = vmatpush2.msra.mxu0 %v1644
          %1861 = vmatprep.subr.mxu0 %v1643
          %1862 = vmatpush2.msra.mxu0 %v1642
          %1863 = vmatprep.mubr.f32.mxu0 %v1785
          %1864 = vmatmul.mubr.f32.gmra.mxu0 %v1783
          %v1865 = vpop.f32.mrf.mxu0
          %v1866 = vadd.f32 %v1792, %v1865
          %v1867 = vpop.f32.mrf.mxu0
          %v1868 = vadd.f32 %v1796, %v1867
          %1869 = vdwg.mxu0
          %1870 = vst [vmem:[%s632] sm:$0xff] %v1866
          %1871 = vst [vmem:[%s632 + $0x8] sm:$0xff] %v1868
          %v1872 = vld [vmem:[#allocation2] sm:$0xff]
          %v1873 = vld [vmem:[#allocation2 + $0x8] sm:$0xff]
          %v1874 = vld [vmem:[%s553 + $0x20] sm:$0xff]
          %v1875 = vld [vmem:[%s553 + $0x28] sm:$0xff]
          %v1876 = vld [vmem:[%s553 + $0x30] sm:$0xff]
          %v1877 = vld [vmem:[%s553 + $0x38] sm:$0xff]
          %1880 = vrot.lane.b32.xlu0 %v1872, 120
          %v1881 = vpop.permute.xlu0 %1880
          %1882 = vrot.lane.b32.xlu0 %v1873, 120
          %v1883 = vpop.permute.xlu0 %1882
          %1886 = vxpose.xlu0.b32.start [1/16] %v1881, 128
          %1887 = vxpose.xlu0.b32.cont [2/16] %v1883, 128
          %1888 = vxpose.xlu0.b32.cont [3/16] 0.0, 128
          %1889 = vxpose.xlu0.b32.cont [4/16] 0.0, 128
          %1890 = vxpose.xlu0.b32.cont [5/16] 0.0, 128
          %1891 = vxpose.xlu0.b32.cont [6/16] 0.0, 128
          %1892 = vxpose.xlu0.b32.cont [7/16] 0.0, 128
          %1893 = vxpose.xlu0.b32.cont [8/16] 0.0, 128
          %1894 = vxpose.xlu0.b32.cont [9/16] 0.0, 128
          %1895 = vxpose.xlu0.b32.cont [10/16] 0.0, 128
          %1896 = vxpose.xlu0.b32.cont [11/16] 0.0, 128
          %1897 = vxpose.xlu0.b32.cont [12/16] 0.0, 128
          %1898 = vxpose.xlu0.b32.cont [13/16] 0.0, 128
          %1899 = vxpose.xlu0.b32.cont [14/16] 0.0, 128
          %1900 = vxpose.xlu0.b32.cont [15/16] 0.0, 128
          %1901 = vxpose.xlu0.b32.end [16/16] 0.0, 128
          %v1902 = vpop.trf.xlu0
          %v1903 = vpop.trf.xlu0
          %v1904 = vpop.trf.xlu0
          %v1905 = vpop.trf.xlu0
          %v1906 = vpop.trf.xlu0
          %v1907 = vpop.trf.xlu0
          %v1908 = vpop.trf.xlu0
          %v1909 = vpop.trf.xlu0
          %v1910 = vpop.trf.xlu0
          %v1911 = vpop.trf.xlu0
          %v1912 = vpop.trf.xlu0
          %v1913 = vpop.trf.xlu0
          %v1914 = vpop.trf.xlu0
          %v1915 = vpop.trf.xlu0
          %v1916 = vpop.trf.xlu0
          %v1917 = vpop.trf.xlu0
          %v1919 = vsel %vm1712, %v1902, 0
          %1921 = vmatprep.subr.mxu0 0.0
          %1922 = vmatpush1.msra.mxu0 0.0
          %1923 = vmatprep.subr.mxu0 0.0
          %1924 = vmatpush1.msra.mxu0 0.0
          %1925 = vmatprep.subr.mxu0 0.0
          %1926 = vmatpush1.msra.mxu0 0.0
          %1927 = vmatprep.subr.mxu0 0.0
          %1928 = vmatpush1.msra.mxu0 0.0
          %1929 = vmatprep.subr.mxu0 0.0
          %1930 = vmatpush1.msra.mxu0 0.0
          %1931 = vmatprep.subr.mxu0 0.0
          %1932 = vmatpush1.msra.mxu0 0.0
          %1933 = vmatprep.subr.mxu0 0.0
          %1934 = vmatpush1.msra.mxu0 0.0
          %1935 = vmatprep.subr.mxu0 0.0
          %1936 = vmatpush1.msra.mxu0 0.0
          %1937 = vmatprep.subr.mxu0 0.0
          %1938 = vmatpush1.msra.mxu0 0.0
          %1939 = vmatprep.subr.mxu0 0.0
          %1940 = vmatpush1.msra.mxu0 0.0
          %1941 = vmatprep.subr.mxu0 0.0
          %1942 = vmatpush1.msra.mxu0 0.0
          %1943 = vmatprep.subr.mxu0 0.0
          %1944 = vmatpush1.msra.mxu0 0.0
          %1945 = vmatprep.subr.mxu0 0.0
          %1946 = vmatpush1.msra.mxu0 0.0
          %1947 = vmatprep.subr.mxu0 0.0
          %1948 = vmatpush1.msra.mxu0 0.0
          %1949 = vmatprep.subr.mxu0 %v1877
          %1950 = vmatpush1.msra.mxu0 %v1876
          %1951 = vmatprep.subr.mxu0 %v1875
          %1952 = vmatpush1.msra.mxu0 %v1874
          %1953 = vmatprep.subr.mxu0 0.0
          %1954 = vmatpush2.msra.mxu0 0.0
          %1955 = vmatprep.subr.mxu0 0.0
          %1956 = vmatpush2.msra.mxu0 0.0
          %1957 = vmatprep.subr.mxu0 0.0
          %1958 = vmatpush2.msra.mxu0 0.0
          %1959 = vmatprep.subr.mxu0 0.0
          %1960 = vmatpush2.msra.mxu0 0.0
          %1961 = vmatprep.subr.mxu0 0.0
          %1962 = vmatpush2.msra.mxu0 0.0
          %1963 = vmatprep.subr.mxu0 0.0
          %1964 = vmatpush2.msra.mxu0 0.0
          %1965 = vmatprep.subr.mxu0 0.0
          %1966 = vmatpush2.msra.mxu0 0.0
          %1967 = vmatprep.subr.mxu0 0.0
          %1968 = vmatpush2.msra.mxu0 0.0
          %1969 = vmatprep.subr.mxu0 0.0
          %1970 = vmatpush2.msra.mxu0 0.0
          %1971 = vmatprep.subr.mxu0 0.0
          %1972 = vmatpush2.msra.mxu0 0.0
          %1973 = vmatprep.subr.mxu0 0.0
          %1974 = vmatpush2.msra.mxu0 0.0
          %1975 = vmatprep.subr.mxu0 0.0
          %1976 = vmatpush2.msra.mxu0 0.0
          %1977 = vmatprep.subr.mxu0 0.0
          %1978 = vmatpush2.msra.mxu0 0.0
          %1979 = vmatprep.subr.mxu0 0.0
          %1980 = vmatpush2.msra.mxu0 0.0
          %1981 = vmatprep.subr.mxu0 0.0
          %1982 = vmatpush2.msra.mxu0 0.0
          %1983 = vmatprep.subr.mxu0 0.0
          %1984 = vmatpush2.msra.mxu0 0.0
          %1985 = vmatprep.mubr.f32.mxu0 0.0
          %1986 = vmatmul.mubr.f32.gmra.mxu0 %v1919
          %v1987 = vpop.f32.mrf.mxu0
          %v1988 = vadd.f32 0.0, %v1987
          %v1989 = vpop.f32.mrf.mxu0
          %v1990 = vadd.f32 0.0, %v1989
          %1991 = vdwg.mxu0
          %v1992 = vld [vmem:[%s654] sm:$0x3]
          %v1994 = vlaneseq
          %v1995 = vshrl.u32 %v1994, 7
          %v1996 = vsub.s32 0, %v1995
          %v1997 = vrot.slane %v1992, %v1996
          %v1998 = vlaneseq
          %v1999 = vshrl.u32 %v1998, 7
          %v2000 = vsub.s32 1, %v1999
          %v2001 = vrot.slane %v1992, %v2000
          %2004 = vmatprep.subr.mxu0 %v1641
          %2005 = vmatpush1.msra.mxu0 %v1640
          %2006 = vmatprep.subr.mxu0 %v1639
          %2007 = vmatpush1.msra.mxu0 %v1638
          %2008 = vmatprep.subr.mxu0 %v1637
          %2009 = vmatpush1.msra.mxu0 %v1636
          %2010 = vmatprep.subr.mxu0 %v1635
          %2011 = vmatpush1.msra.mxu0 %v1634
          %2012 = vmatprep.subr.mxu0 %v1633
          %2013 = vmatpush1.msra.mxu0 %v1632
          %2014 = vmatprep.subr.mxu0 %v1631
          %2015 = vmatpush1.msra.mxu0 %v1630
          %2016 = vmatprep.subr.mxu0 %v1629
          %2017 = vmatpush1.msra.mxu0 %v1628
          %2018 = vmatprep.subr.mxu0 %v1627
          %2019 = vmatpush1.msra.mxu0 %v1626
          %2020 = vmatprep.subr.mxu0 %v1625
          %2021 = vmatpush1.msra.mxu0 %v1624
          %2022 = vmatprep.subr.mxu0 %v1623
          %2023 = vmatpush1.msra.mxu0 %v1622
          %2024 = vmatprep.subr.mxu0 %v1621
          %2025 = vmatpush1.msra.mxu0 %v1620
          %2026 = vmatprep.subr.mxu0 %v1619
          %2027 = vmatpush1.msra.mxu0 %v1618
          %2028 = vmatprep.subr.mxu0 %v1617
          %2029 = vmatpush1.msra.mxu0 %v1616
          %2030 = vmatprep.subr.mxu0 %v1615
          %2031 = vmatpush1.msra.mxu0 %v1614
          %2032 = vmatprep.subr.mxu0 %v1613
          %2033 = vmatpush1.msra.mxu0 %v1612
          %2034 = vmatprep.subr.mxu0 %v1611
          %2035 = vmatpush1.msra.mxu0 %v1610
          %2036 = vmatprep.subr.mxu0 %v1673
          %2037 = vmatpush2.msra.mxu0 %v1672
          %2038 = vmatprep.subr.mxu0 %v1671
          %2039 = vmatpush2.msra.mxu0 %v1670
          %2040 = vmatprep.subr.mxu0 %v1669
          %2041 = vmatpush2.msra.mxu0 %v1668
          %2042 = vmatprep.subr.mxu0 %v1667
          %2043 = vmatpush2.msra.mxu0 %v1666
          %2044 = vmatprep.subr.mxu0 %v1665
          %2045 = vmatpush2.msra.mxu0 %v1664
          %2046 = vmatprep.subr.mxu0 %v1663
          %2047 = vmatpush2.msra.mxu0 %v1662
          %2048 = vmatprep.subr.mxu0 %v1661
          %2049 = vmatpush2.msra.mxu0 %v1660
          %2050 = vmatprep.subr.mxu0 %v1659
          %2051 = vmatpush2.msra.mxu0 %v1658
          %2052 = vmatprep.subr.mxu0 %v1657
          %2053 = vmatpush2.msra.mxu0 %v1656
          %2054 = vmatprep.subr.mxu0 %v1655
          %2055 = vmatpush2.msra.mxu0 %v1654
          %2056 = vmatprep.subr.mxu0 %v1653
          %2057 = vmatpush2.msra.mxu0 %v1652
          %2058 = vmatprep.subr.mxu0 %v1651
          %2059 = vmatpush2.msra.mxu0 %v1650
          %2060 = vmatprep.subr.mxu0 %v1649
          %2061 = vmatpush2.msra.mxu0 %v1648
          %2062 = vmatprep.subr.mxu0 %v1647
          %2063 = vmatpush2.msra.mxu0 %v1646
          %2064 = vmatprep.subr.mxu0 %v1645
          %2065 = vmatpush2.msra.mxu0 %v1644
          %2066 = vmatprep.subr.mxu0 %v1643
          %2067 = vmatpush2.msra.mxu0 %v1642
          %2068 = vmatprep.mubr.f32.mxu0 %v1990
          %2069 = vmatmul.mubr.f32.gmra.mxu0 %v1988
          %v2070 = vpop.f32.mrf.mxu0
          %v2071 = vadd.f32 %v1997, %v2070
          %v2072 = vpop.f32.mrf.mxu0
          %v2073 = vadd.f32 %v2001, %v2072
          %2074 = vdwg.mxu0
          %2075 = vst [vmem:[%s632 + $0x10] sm:$0xff] %v2071
          %2076 = vst [vmem:[%s632 + $0x18] sm:$0xff] %v2073
        $region114: #{cross_transformer.1} parent=89 // pred_fallthru
          _
        %s2077 = sand.u32 %s300, 1
        %s2078 = scalar_lea.sflag [#allocation6], %s2077
        %s2079 = sand.u32 %s300, 1
        %s2080 = smul.addr %s2079, 32
        %s2081 = scalar_lea.vmem [#allocation5], %s2080
        // Predicated region
        $region115: #{cross_transformer.1} parent=89 // pred_check
          %p2082 = pneg %p310
        $region116: #{cross_transformer.1} parent=89 // pred_check_branch
          %2084 = sbr.rel (%p2082) target = $region118
        $region117: #{cross_transformer.1} parent=89 // pred_region
          %s2085 = smul.u32 %s31, %s30
          %s2086 = smul.u32 2, %s2085
          %s2088 = ssub.s32 512, 512
          %2089 = vsyncadd %s2078, %s2088
          %s2090 = smul.addr %s2086, 128
          %s2091 = scalar_lea.hbm %s8, %s2090
          %s2092 = sshll.u32 %s2081, 4
          %s2093 = int_to_ptr.vmem [resolvable:$true] %s2092
          %2098 = dma.vmem_to_hbm [thread:$0]  %s2093, 512, %s2091, %s2078, 256, 1024, 16
        $region118: #{cross_transformer.1} parent=89 // pred_fallthru
          _
        // Predicated region
        $region119: #{cross_transformer.1} parent=89 // pred_check
          %p2099 = pneg %p331
        $region120: #{cross_transformer.1} parent=89 // pred_check_branch
          %2101 = sbr.rel (%p2099) target = $region122
        $region121: #{cross_transformer.1} parent=89 // pred_region
          %s2103 = ssub.s32 16, 16
          %2104 = vsyncadd [#allocation8], %s2103
          %s2106 = sshll.u32 [#allocation7], 4
          %s2107 = int_to_ptr.vmem [resolvable:$true] %s2106
          %2109 = dma.vmem_to_hbm [thread:$0]  %s2107, 16, %s9, [#allocation8]
        $region122: #{cross_transformer.1} parent=89 // pred_fallthru
          _
        // Predicated region
        $region123: #{cross_transformer.1} parent=89 // pred_check
          %p2110 = pneg %p352
        $region124: #{cross_transformer.1} parent=89 // pred_check_branch
          %2112 = sbr.rel (%p2110) target = $region126
        $region125: #{cross_transformer.1} parent=89 // pred_region
          _
        $region126: #{cross_transformer.1} parent=89 // pred_fallthru
          _
        // Predicated region
        $region127: #{cross_transformer.1} parent=89 // pred_check
          %p2113 = pneg %p331
        $region128: #{cross_transformer.1} parent=89 // pred_check_branch
          %2115 = sbr.rel (%p2113) target = $region130
        $region129: #{cross_transformer.1} parent=89 // pred_region
          %2116 = dma.done [#allocation8], 16
        $region130: #{cross_transformer.1} parent=89 // pred_fallthru
          _
        // Predicated region
        $region131: #{cross_transformer.1} parent=89 // pred_check
          %p2117 = pneg %p352
        $region132: #{cross_transformer.1} parent=89 // pred_check_branch
          %2119 = sbr.rel (%p2117) target = $region134
        $region133: #{cross_transformer.1} parent=89 // pred_region
          _
        $region134: #{cross_transformer.1} parent=89 // pred_fallthru
          _
      $region90: #{cross_transformer.1} parent=5 // pred_fallthru
        _
      %p2120 = scmp.le.s32.totalorder 2, %s21
      // Predicated region
      $region135: #{cross_transformer.1} parent=5 // pred_check
        %p2121 = pneg %p2120
      $region136: #{cross_transformer.1} parent=5 // pred_check_branch
        %2123 = sbr.rel (%p2121) target = $region138
      $region137: #{cross_transformer.1} parent=5 // pred_region
        %s2124 = ssub.s32 %s21, 2
        // Predicated region
        $region139: #{cross_transformer.1} parent=137 // pred_check
          %p2125 = pneg %p316
        $region140: #{cross_transformer.1} parent=137 // pred_check_branch
          %2127 = sbr.rel (%p2125) target = $region142
        $region141: #{cross_transformer.1} parent=137 // pred_region
          %s2128 = sand.u32 %s301, 1
          %s2129 = scalar_lea.sflag [#allocation6], %s2128
          %s2130 = sand.u32 %s301, 1
          %s2131 = smul.addr %s2130, 32
          %s2132 = scalar_lea.vmem [#allocation5], %s2131
          %2133 = dma.done %s2129, 512
        $region142: #{cross_transformer.1} parent=137 // pred_fallthru
          _
      $region138: #{cross_transformer.1} parent=5 // pred_fallthru
        _
    $region6: #{cross_transformer.1} parent=1 // loop_footer
      %s25 = sadd.s32 1, %s21
    $region7: #{cross_transformer.1} parent=1 // loop_footer_branch
      %20 = sbr.rel target = $region3
    $region8: #{cross_transformer.1} parent=1 // loop_exit
      _
    %2134 = vsyncpa [#allocation6], 1
    %s2135 = scalar_lea.sflag [#allocation6], 1
    %2136 = vsyncpa %s2135, 1
    %2137 = vsyncpa [#allocation8], 1

</llo_original>
